<compile_context>
chip_gen: v7x
topology: tpu7x:2x2x1
jax: 0.10.0
libtpu: 0.0.40
codegen_flags: <defaults>
</compile_context>

<pallas_src>
import functools

import jax
import jax.numpy as jnp
from jax.experimental import pallas as pl
from jax.experimental.pallas import tpu as pltpu


def _round_up(a, b):
    return (a + b - 1) // b * b


# ---------------------------------------------------------------------------
# Pallas kernel: one (image, output-row-tile) per grid step
# ---------------------------------------------------------------------------
def _pruning_conv_kernel(x_ref, w_ref, b_ref, o_ref, *,
                         kh, kw, dilation, wp, m_t, c_out, row_tiled):
    """x_ref : (C_in, L)            flattened zero-padded image
       w_ref : (KH*KW, C_out, C_in) pre-masked weights (grid-resident)
       b_ref : (C_out, 1)           pre-masked bias, f32
       o_ref : (C_out, m_t)         "wide" output tile (Wp-wide rows)"""
    if row_tiled:
        base = pl.multiple_of(pl.program_id(1) * m_t, 128)
    else:
        base = 0

    # Fold the bias into the accumulator init (saves an epilogue VPU pass).
    acc = jnp.broadcast_to(b_ref[...], (c_out, m_t)).astype(jnp.float32)

    # Reduction over the KH*KW taps is a static Python loop: each tap is one
    # contiguous lane-range load of the flattened image + one MXU matmul.
    for i in range(kh):
        for j in range(kw):
            off = (i * wp + j) * dilation
            if row_tiled:
                patch = x_ref[:, pl.ds(base + off, m_t)]        # (C_in, m_t)
            else:
                patch = x_ref[:, off:off + m_t]                  # static slice
            acc = acc + jnp.dot(w_ref[i * kw + j], patch,
                                preferred_element_type=jnp.float32)

    o_ref[...] = acc.astype(o_ref.dtype)


# ---------------------------------------------------------------------------
# Wrapper
# ---------------------------------------------------------------------------
def pruning_conv2d_forward(x, weight, bias, mask_w, mask_cw, mask_b, mask_cb,
                           *, stride=1, padding=1, dilation=1,
                           sigmoid_multiplier=10.0, compute_dtype=None):
    """x: (N, C_in, H, W) NCHW. weight: (C_out, C_in, KH, KW). Returns NCHW.

    compute_dtype=jnp.bfloat16 halves HBM traffic / VMEM (f32 accumulation is
    kept); default None keeps full f32 so the numeric check stays tight."""
    n, c_in, h, w = x.shape
    c_out, c_in_w, kh, kw = weight.shape
    assert c_in_w == c_in, "groups != 1 not supported"   # TODO(synk): groups
    out_dtype = x.dtype

    # ---- mask weights / bias ONCE (hoisted out of the kernel grid) ---------
    w_m = weight * jax.nn.sigmoid((mask_w - mask_cw) * sigmoid_multiplier)
    w_pos = jnp.transpose(w_m, (2, 3, 0, 1)).reshape(kh * kw, c_out, c_in)
    if bias is None:
        b_m = jnp.zeros((c_out, 1), jnp.float32)
    else:
        b_m = bias * jax.nn.sigmoid((mask_b - mask_cb) * sigmoid_multiplier)
        b_m = b_m.reshape(c_out, 1).astype(jnp.float32)

    if compute_dtype is not None:        # cast BEFORE padding/flattening
        x = x.astype(compute_dtype)
        w_pos = w_pos.astype(compute_dtype)

    # ---- zero-pad + flatten spatial dims (no im2col duplication) -----------
    hp, wpd = h + 2 * padding, w + 2 * padding
    oh = (hp - dilation * (kh - 1) - 1) // stride + 1
    ow = (wpd - dilation * (kw - 1) - 1) // stride + 1
    oh1 = hp - dilation * (kh - 1)            # stride-1 ("full") output rows
    extra = (kw - 1) * dilation
    xp = jnp.pad(x, ((0, 0), (0, 0), (padding, padding), (padding, padding)))
    x_flat = xp.reshape(n, c_in, hp * wpd)
    if extra:
        x_flat = jnp.pad(x_flat, ((0, 0), (0, 0), (0, extra)))
    L = hp * wpd + extra
    m_img = oh1 * wpd                          # wide flattened output / image

    # ---- output-row tiling against a per-generation VMEM budget ------------
    bpe_in = jnp.dtype(x_flat.dtype).itemsize
    bpe_out = jnp.dtype(out_dtype).itemsize

    def _vmem_est(m_t):
        m_t_p = _round_up(m_t, 128)
        co_p = _round_up(c_out, 8)
        ci_p = _round_up(c_in, 8)
        est = (2 * ci_p * _round_up(L, 128) * bpe_in             # x image (x2)
               + 2 * kh * kw * co_p * _round_up(c_in, 128) * bpe_in  # weights
               + 2 * co_p * 128 * 4                              # bias
               + 2 * co_p * m_t_p * bpe_out                      # out tile (x2)
               + co_p * m_t_p * 4                                # f32 acc
               + 2 * ci_p * m_t_p * bpe_in)                      # patch temps
        return est + (4 << 20)                                   # headroom

    cap = 64 * 1024 * 1024
    try:
        cap = int(getattr(pltpu.get_tpu_info(), "vmem_capacity_bytes", cap))
    except Exception:
        pass
    budget = cap * 3 // 4          # ~48 MiB on v7x, ~96 MiB on v5e/v6e

    oh_t, row_tiles = oh1, 1
    if _vmem_est(m_img) > budget:
        for cand in range(oh1 - 1, 0, -1):
            if (oh1 % cand == 0 and (cand * wpd) % 128 == 0
                    and _vmem_est(cand * wpd) <= budget):
                oh_t, row_tiles = cand, oh1 // cand
                break
        # TODO(synk): if no 128-aligned row split fits, x should stay in HBM
        # (memory_space=pl.ANY) with manual row-slab DMA; not implemented.
    m_t = oh_t * wpd
    vmem_limit = int(min(max(_vmem_est(m_t), 32 << 20), budget))
    row_tiled = row_tiles > 1

    kernel = functools.partial(_pruning_conv_kernel, kh=kh, kw=kw,
                               dilation=dilation, wp=wpd, m_t=m_t,
                               c_out=c_out, row_tiled=row_tiled)

    if row_tiled:
        grid = (n, row_tiles)
        x_spec = pl.BlockSpec((None, c_in, L), lambda b, r: (b, 0, 0))
        w_spec = pl.BlockSpec((kh * kw, c_out, c_in), lambda b, r: (0, 0, 0))
        b_spec = pl.BlockSpec((c_out, 1), lambda b, r: (0, 0))
        o_spec = pl.BlockSpec((None, c_out, m_t), lambda b, r: (b, 0, r))
        dims = ("parallel", "parallel")
    else:
        grid = (n,)
        x_spec = pl.BlockSpec((None, c_in, L), lambda b: (b, 0, 0))
        w_spec = pl.BlockSpec((kh * kw, c_out, c_in), lambda b: (0, 0, 0))
        b_spec = pl.BlockSpec((c_out, 1), lambda b: (0, 0))
        o_spec = pl.BlockSpec((None, c_out, m_t), lambda b: (b, 0, 0))
        dims = ("parallel",)

    out = pl.pallas_call(
        kernel,
        out_shape=jax.ShapeDtypeStruct((n, c_out, row_tiles * m_t), out_dtype),
        grid_spec=pltpu.PrefetchScalarGridSpec(
            num_scalar_prefetch=0,
            grid=grid,
            in_specs=[x_spec, w_spec, b_spec],
            out_specs=o_spec,
        ),
        compiler_params=pltpu.CompilerParams(
            dimension_semantics=dims,
            vmem_limit_bytes=vmem_limit),
    )(x_flat, w_pos, b_m)

    # (N, C_out, OH1*Wp) -> NCHW: trim garbage columns + stride subsample.
    y_full = out.reshape(n, c_out, oh1, wpd)
    return y_full[:, :,
                  :(oh - 1) * stride + 1:stride,
                  :(ow - 1) * stride + 1:stride]


# ---------------------------------------------------------------------------
# Reference (plain JAX) for a correctness sanity check
# ---------------------------------------------------------------------------
def _reference(x, weight, bias, mask_w, mask_cw, mask_b, mask_cb,
               *, stride, padding, dilation, sigmoid_multiplier):
    w_m = weight * jax.nn.sigmoid((mask_w - mask_cw) * sigmoid_multiplier)
    y = jax.lax.conv_general_dilated(
        x, w_m,
        window_strides=(stride, stride),
        padding=[(padding, padding), (padding, padding)],
        rhs_dilation=(dilation, dilation),
        dimension_numbers=("NCHW", "OIHW", "NCHW"))
    if bias is not None:
        b_m = bias * jax.nn.sigmoid((mask_b - mask_cb) * sigmoid_multiplier)
        y = y + b_m[None, :, None, None]
    return y


if __name__ == "__main__":
    key = jax.random.PRNGKey(0)
    k0, k1, k2, k3, k4 = jax.random.split(key, 5)

    # Small Conv2d: in=4, out=8, kernel=3x3, stride=1, padding=1, dilation=1
    N, C_in, H, W = 2, 4, 16, 16
    C_out, KH, KW = 8, 3, 3
    stride, padding, dilation = 1, 1, 1
    sigmoid_multiplier = 10.0

    x = jax.random.normal(k0, (N, C_in, H, W), dtype=jnp.float32)
    weight = jax.random.normal(k1, (C_out, C_in, KH, KW), dtype=jnp.float32) * 0.1
    bias = jax.random.normal(k2, (C_out,), dtype=jnp.float32) * 0.1

    # PruningConv2d.__init__ (method='learnable', sparsity_pattern='uniform'):
    #   mask_weights = 2*ones_like(weight); mask_centers_weight = ones_like(weight)
    #   mask_bias    = 2*ones_like(bias);   mask_centers_bias    = ones_like(bias)
    # Perturb mask params deterministically so the sigmoid mask is non-trivial.
    mask_w = jnp.ones_like(weight) * 2.0 + 0.5 * jax.random.normal(k3, weight.shape)
    mask_cw = jnp.ones_like(weight)
    mask_b = jnp.ones_like(bias) * 2.0 + 0.5 * jax.random.normal(k4, bias.shape)
    mask_cb = jnp.ones_like(bias)

    y = pruning_conv2d_forward(
        x, weight, bias, mask_w, mask_cw, mask_b, mask_cb,
        stride=stride, padding=padding, dilation=dilation,
        sigmoid_multiplier=sigmoid_multiplier)
    y = jax.block_until_ready(y)

    y_ref = _reference(
        x, weight, bias, mask_w, mask_cw, mask_b, mask_cb,
        stride=stride, padding=padding, dilation=dilation,
        sigmoid_multiplier=sigmoid_multiplier)

    assert y.shape == (N, C_out, H, W)
    assert jnp.allclose(y, y_ref, atol=1e-4, rtol=1e-4)

    print("KERNEL_OK")
</pallas_src>

<mosaic_0001>
module attributes {stable_mosaic.version = 11 : i64} {
  func.func @_pruning_conv_kernel(%arg0: i32, %arg1: memref<1x4x326xf32, #tpu.memory_space<vmem>>, %arg2: memref<9x8x4xf32, #tpu.memory_space<vmem>>, %arg3: memref<8x1xf32, #tpu.memory_space<vmem>>, %arg4: memref<1x8x288xf32, #tpu.memory_space<vmem>>) attributes {dimension_semantics = [#tpu.dimension_semantics<parallel>], iteration_bounds = array<i64: 2>, scalar_prefetch = 0 : i64, scratch_operands = 0 : i64, tpu.core_type = #tpu.core_type<tc>, window_params = [{transform_indices = @transform_0, window_bounds = array<i64: 1, 4, 326>}, {pipeline_mode = #tpu.pipeline_mode<synchronous>, transform_indices = @transform_1, window_bounds = array<i64: 9, 8, 4>}, {pipeline_mode = #tpu.pipeline_mode<synchronous>, transform_indices = @transform_2, window_bounds = array<i64: 8, 1>}, {transform_indices = @transform_3, window_bounds = array<i64: 1, 8, 288>}]} {
    %c0 = arith.constant 0 : index
    %c0_0 = arith.constant 0 : index
    %0 = vector.load %arg3[%c0, %c0_0] : memref<8x1xf32, #tpu.memory_space<vmem>>, vector<8x1xf32>
    %1 = vector.shape_cast %0 : vector<8x1xf32> to vector<8x1xf32>
    %2 = vector.broadcast %1 : vector<8x1xf32> to vector<8x288xf32>
    %c0_1 = arith.constant 0 : index
    %c0_2 = arith.constant 0 : index
    %c0_3 = arith.constant 0 : index
    %3 = vector.load %arg1[%c0_1, %c0_2, %c0_3] : memref<1x4x326xf32, #tpu.memory_space<vmem>>, vector<1x4x288xf32>
    %4 = vector.shape_cast %3 : vector<1x4x288xf32> to vector<4x288xf32>
    %c0_4 = arith.constant 0 : index
    %c0_5 = arith.constant 0 : index
    %c0_6 = arith.constant 0 : index
    %5 = vector.load %arg2[%c0_4, %c0_5, %c0_6] : memref<9x8x4xf32, #tpu.memory_space<vmem>>, vector<1x8x4xf32>
    %6 = vector.shape_cast %5 : vector<1x8x4xf32> to vector<8x4xf32>
    %cst = arith.constant dense<0.000000e+00> : vector<8x288xf32>
    %7 = tpu.matmul %6, %4, %cst {dimension_numbers = #tpu.dot_dimension_numbers<[1], [0], [0], [1], [0, 0, 1, 1], [], []>} : vector<8x4xf32>, vector<4x288xf32>, vector<8x288xf32> -> vector<8x288xf32>
    %8 = arith.addf %2, %7 : vector<8x288xf32>
    %c0_7 = arith.constant 0 : index
    %c0_8 = arith.constant 0 : index
    %c1 = arith.constant 1 : index
    %9 = vector.load %arg1[%c0_7, %c0_8, %c1] : memref<1x4x326xf32, #tpu.memory_space<vmem>>, vector<1x4x288xf32>
    %10 = vector.shape_cast %9 : vector<1x4x288xf32> to vector<4x288xf32>
    %c1_9 = arith.constant 1 : index
    %c0_10 = arith.constant 0 : index
    %c0_11 = arith.constant 0 : index
    %11 = vector.load %arg2[%c1_9, %c0_10, %c0_11] : memref<9x8x4xf32, #tpu.memory_space<vmem>>, vector<1x8x4xf32>
    %12 = vector.shape_cast %11 : vector<1x8x4xf32> to vector<8x4xf32>
    %cst_12 = arith.constant dense<0.000000e+00> : vector<8x288xf32>
    %13 = tpu.matmul %12, %10, %cst_12 {dimension_numbers = #tpu.dot_dimension_numbers<[1], [0], [0], [1], [0, 0, 1, 1], [], []>} : vector<8x4xf32>, vector<4x288xf32>, vector<8x288xf32> -> vector<8x288xf32>
    %14 = arith.addf %8, %13 : vector<8x288xf32>
    %c0_13 = arith.constant 0 : index
    %c0_14 = arith.constant 0 : index
    %c2 = arith.constant 2 : index
    %15 = vector.load %arg1[%c0_13, %c0_14, %c2] : memref<1x4x326xf32, #tpu.memory_space<vmem>>, vector<1x4x288xf32>
    %16 = vector.shape_cast %15 : vector<1x4x288xf32> to vector<4x288xf32>
    %c2_15 = arith.constant 2 : index
    %c0_16 = arith.constant 0 : index
    %c0_17 = arith.constant 0 : index
    %17 = vector.load %arg2[%c2_15, %c0_16, %c0_17] : memref<9x8x4xf32, #tpu.memory_space<vmem>>, vector<1x8x4xf32>
    %18 = vector.shape_cast %17 : vector<1x8x4xf32> to vector<8x4xf32>
    %cst_18 = arith.constant dense<0.000000e+00> : vector<8x288xf32>
    %19 = tpu.matmul %18, %16, %cst_18 {dimension_numbers = #tpu.dot_dimension_numbers<[1], [0], [0], [1], [0, 0, 1, 1], [], []>} : vector<8x4xf32>, vector<4x288xf32>, vector<8x288xf32> -> vector<8x288xf32>
    %20 = arith.addf %14, %19 : vector<8x288xf32>
    %c0_19 = arith.constant 0 : index
    %c0_20 = arith.constant 0 : index
    %c18 = arith.constant 18 : index
    %21 = vector.load %arg1[%c0_19, %c0_20, %c18] : memref<1x4x326xf32, #tpu.memory_space<vmem>>, vector<1x4x288xf32>
    %22 = vector.shape_cast %21 : vector<1x4x288xf32> to vector<4x288xf32>
    %c3 = arith.constant 3 : index
    %c0_21 = arith.constant 0 : index
    %c0_22 = arith.constant 0 : index
    %23 = vector.load %arg2[%c3, %c0_21, %c0_22] : memref<9x8x4xf32, #tpu.memory_space<vmem>>, vector<1x8x4xf32>
    %24 = vector.shape_cast %23 : vector<1x8x4xf32> to vector<8x4xf32>
    %cst_23 = arith.constant dense<0.000000e+00> : vector<8x288xf32>
    %25 = tpu.matmul %24, %22, %cst_23 {dimension_numbers = #tpu.dot_dimension_numbers<[1], [0], [0], [1], [0, 0, 1, 1], [], []>} : vector<8x4xf32>, vector<4x288xf32>, vector<8x288xf32> -> vector<8x288xf32>
    %26 = arith.addf %20, %25 : vector<8x288xf32>
    %c0_24 = arith.constant 0 : index
    %c0_25 = arith.constant 0 : index
    %c19 = arith.constant 19 : index
    %27 = vector.load %arg1[%c0_24, %c0_25, %c19] : memref<1x4x326xf32, #tpu.memory_space<vmem>>, vector<1x4x288xf32>
    %28 = vector.shape_cast %27 : vector<1x4x288xf32> to vector<4x288xf32>
    %c4 = arith.constant 4 : index
    %c0_26 = arith.constant 0 : index
    %c0_27 = arith.constant 0 : index
    %29 = vector.load %arg2[%c4, %c0_26, %c0_27] : memref<9x8x4xf32, #tpu.memory_space<vmem>>, vector<1x8x4xf32>
    %30 = vector.shape_cast %29 : vector<1x8x4xf32> to vector<8x4xf32>
    %cst_28 = arith.constant dense<0.000000e+00> : vector<8x288xf32>
    %31 = tpu.matmul %30, %28, %cst_28 {dimension_numbers = #tpu.dot_dimension_numbers<[1], [0], [0], [1], [0, 0, 1, 1], [], []>} : vector<8x4xf32>, vector<4x288xf32>, vector<8x288xf32> -> vector<8x288xf32>
    %32 = arith.addf %26, %31 : vector<8x288xf32>
    %c0_29 = arith.constant 0 : index
    %c0_30 = arith.constant 0 : index
    %c20 = arith.constant 20 : index
    %33 = vector.load %arg1[%c0_29, %c0_30, %c20] : memref<1x4x326xf32, #tpu.memory_space<vmem>>, vector<1x4x288xf32>
    %34 = vector.shape_cast %33 : vector<1x4x288xf32> to vector<4x288xf32>
    %c5 = arith.constant 5 : index
    %c0_31 = arith.constant 0 : index
    %c0_32 = arith.constant 0 : index
    %35 = vector.load %arg2[%c5, %c0_31, %c0_32] : memref<9x8x4xf32, #tpu.memory_space<vmem>>, vector<1x8x4xf32>
    %36 = vector.shape_cast %35 : vector<1x8x4xf32> to vector<8x4xf32>
    %cst_33 = arith.constant dense<0.000000e+00> : vector<8x288xf32>
    %37 = tpu.matmul %36, %34, %cst_33 {dimension_numbers = #tpu.dot_dimension_numbers<[1], [0], [0], [1], [0, 0, 1, 1], [], []>} : vector<8x4xf32>, vector<4x288xf32>, vector<8x288xf32> -> vector<8x288xf32>
    %38 = arith.addf %32, %37 : vector<8x288xf32>
    %c0_34 = arith.constant 0 : index
    %c0_35 = arith.constant 0 : index
    %c36 = arith.constant 36 : index
    %39 = vector.load %arg1[%c0_34, %c0_35, %c36] : memref<1x4x326xf32, #tpu.memory_space<vmem>>, vector<1x4x288xf32>
    %40 = vector.shape_cast %39 : vector<1x4x288xf32> to vector<4x288xf32>
    %c6 = arith.constant 6 : index
    %c0_36 = arith.constant 0 : index
    %c0_37 = arith.constant 0 : index
    %41 = vector.load %arg2[%c6, %c0_36, %c0_37] : memref<9x8x4xf32, #tpu.memory_space<vmem>>, vector<1x8x4xf32>
    %42 = vector.shape_cast %41 : vector<1x8x4xf32> to vector<8x4xf32>
    %cst_38 = arith.constant dense<0.000000e+00> : vector<8x288xf32>
    %43 = tpu.matmul %42, %40, %cst_38 {dimension_numbers = #tpu.dot_dimension_numbers<[1], [0], [0], [1], [0, 0, 1, 1], [], []>} : vector<8x4xf32>, vector<4x288xf32>, vector<8x288xf32> -> vector<8x288xf32>
    %44 = arith.addf %38, %43 : vector<8x288xf32>
    %c0_39 = arith.constant 0 : index
    %c0_40 = arith.constant 0 : index
    %c37 = arith.constant 37 : index
    %45 = vector.load %arg1[%c0_39, %c0_40, %c37] : memref<1x4x326xf32, #tpu.memory_space<vmem>>, vector<1x4x288xf32>
    %46 = vector.shape_cast %45 : vector<1x4x288xf32> to vector<4x288xf32>
    %c7 = arith.constant 7 : index
    %c0_41 = arith.constant 0 : index
    %c0_42 = arith.constant 0 : index
    %47 = vector.load %arg2[%c7, %c0_41, %c0_42] : memref<9x8x4xf32, #tpu.memory_space<vmem>>, vector<1x8x4xf32>
    %48 = vector.shape_cast %47 : vector<1x8x4xf32> to vector<8x4xf32>
    %cst_43 = arith.constant dense<0.000000e+00> : vector<8x288xf32>
    %49 = tpu.matmul %48, %46, %cst_43 {dimension_numbers = #tpu.dot_dimension_numbers<[1], [0], [0], [1], [0, 0, 1, 1], [], []>} : vector<8x4xf32>, vector<4x288xf32>, vector<8x288xf32> -> vector<8x288xf32>
    %50 = arith.addf %44, %49 : vector<8x288xf32>
    %c0_44 = arith.constant 0 : index
    %c0_45 = arith.constant 0 : index
    %c38 = arith.constant 38 : index
    %51 = vector.load %arg1[%c0_44, %c0_45, %c38] : memref<1x4x326xf32, #tpu.memory_space<vmem>>, vector<1x4x288xf32>
    %52 = vector.shape_cast %51 : vector<1x4x288xf32> to vector<4x288xf32>
    %c8 = arith.constant 8 : index
    %c0_46 = arith.constant 0 : index
    %c0_47 = arith.constant 0 : index
    %53 = vector.load %arg2[%c8, %c0_46, %c0_47] : memref<9x8x4xf32, #tpu.memory_space<vmem>>, vector<1x8x4xf32>
    %54 = vector.shape_cast %53 : vector<1x8x4xf32> to vector<8x4xf32>
    %cst_48 = arith.constant dense<0.000000e+00> : vector<8x288xf32>
    %55 = tpu.matmul %54, %52, %cst_48 {dimension_numbers = #tpu.dot_dimension_numbers<[1], [0], [0], [1], [0, 0, 1, 1], [], []>} : vector<8x4xf32>, vector<4x288xf32>, vector<8x288xf32> -> vector<8x288xf32>
    %56 = arith.addf %50, %55 : vector<8x288xf32>
    %c0_49 = arith.constant 0 : index
    %c0_50 = arith.constant 0 : index
    %c0_51 = arith.constant 0 : index
    %57 = vector.load %arg4[%c0_49, %c0_50, %c0_51] : memref<1x8x288xf32, #tpu.memory_space<vmem>>, vector<1x8x288xf32>
    %58 = vector.shape_cast %57 : vector<1x8x288xf32> to vector<8x288xf32>
    %59 = vector.shape_cast %56 : vector<8x288xf32> to vector<1x8x288xf32>
    tpu.vector_store %arg4[%c0_49, %c0_50, %c0_51], %59 {strides = array<i32>} : memref<1x8x288xf32, #tpu.memory_space<vmem>>, vector<1x8x288xf32>,
    return
  }
  func.func @transform_0(%arg0: i32) -> (i32, i32, i32) {
    %c0_i32 = arith.constant 0 : i32
    %c0_i32_0 = arith.constant 0 : i32
    %c0_i32_1 = arith.constant 0 : i32
    return %arg0, %c0_i32, %c0_i32_0 : i32, i32, i32
  }
  func.func @transform_1(%arg0: i32) -> (i32, i32, i32) {
    %c0_i32 = arith.constant 0 : i32
    %c0_i32_0 = arith.constant 0 : i32
    %c0_i32_1 = arith.constant 0 : i32
    %c0_i32_2 = arith.constant 0 : i32
    return %c0_i32, %c0_i32_0, %c0_i32_1 : i32, i32, i32
  }
  func.func @transform_2(%arg0: i32) -> (i32, i32) {
    %c0_i32 = arith.constant 0 : i32
    %c0_i32_0 = arith.constant 0 : i32
    %c0_i32_1 = arith.constant 0 : i32
    return %c0_i32, %c0_i32_0 : i32, i32
  }
  func.func @transform_3(%arg0: i32) -> (i32, i32, i32) {
    %c0_i32 = arith.constant 0 : i32
    %c0_i32_0 = arith.constant 0 : i32
    %c0_i32_1 = arith.constant 0 : i32
    return %arg0, %c0_i32, %c0_i32_0 : i32, i32, i32
  }
}

</mosaic_0001>

<llo_original>
// kernel: tpu_custom_call.1
$region0: #{tpu_custom_call.1}
  #allocation0 [shape = 'u32[]', space=smem, size = 0x4, offset = 0x4, fixed_abs, tag = 'smem constant byte address 0x4 - core index']
  #allocation1 [shape = 'u32[144,128]{1,0:T(1,128)}', space=vmem, size = 0x12000, scoped, tag = 'internal scratch']
  %s0 = inlined_call_operand.vmem [shape: f32[2,4,326], index: 0, kind: input, shape index: {}]
  %s1 = inlined_call_operand.vmem [shape: f32[9,8,4], index: 1, kind: input, shape index: {}]
  %s2 = inlined_call_operand.vmem [shape: f32[8,1], index: 2, kind: input, shape index: {}]
  %s3 = inlined_call_operand.hbm [shape: f32[2,8,288], index: 3, kind: output, shape index: {}]
  %s4 = sld [smem:[#allocation0]]
  $region45: #{tpu_custom_call.1} parent=0
    _
  %s6 = ssub.s32 1, %s4
  %s7 = scalar_select 0, %s6, %s4
  $region1: #{tpu_custom_call.1} parent=0
    #allocation2 [shape = 'u8[24576]{0}', space=vmem, size = 0x6000, scoped, tag = 'output window, operand 0']
    #allocation3 [shape = 's32[2]{0}', space=sflag, size = 0x8, scoped, tag = 'scoped memory for tpu_custom_call.1']
    %8 = vsyncpa [#allocation3], 0
    %s9 = scalar_lea.sflag [#allocation3], 1
    %10 = vsyncpa %s9, 0
    loop: start=0, step=1, limit=4
    $region2: #{tpu_custom_call.1} parent=1 // loop_pre_header
      _
    $region3: #{tpu_custom_call.1} parent=1 // loop_header
      %s12 = sphi 0, %s16
      %p13 = scmp.ge.s32.totalorder %s12, 4
      %s22 = sphi 0, %s24
      %s25 = sphi 0, %s22
      %s26 = sphi 0, %s25
      %s42 = sphi 0, %s26
      %s46 = sphi 0, %s46
      %s48 = sphi 0, %s46
      %s49 = sphi 0, %s48
      %s63 = sphi 0, %s49
      %s67 = sphi 0, %s67
      %s69 = sphi 0, %s67
      %s70 = sphi 0, %s69
      %s84 = sphi 0, %s70
      %s90 = sphi 0, %s92
      %s93 = sphi 0, %s90
      %s94 = sphi 0, %s93
      %s110 = sphi 0, %s94
    $region4: #{tpu_custom_call.1} parent=1 // loop_header_branch
      %15 = sbr.rel (%p13) target = $region8
    $region5: #{tpu_custom_call.1} parent=1 // loop_body
      %s17 = ssub.s32 %s12, 1
      %s18 = ssub.s32 %s12, 2
      %s19 = sadd.s32 %s12, 1
      %s20 = ssub.s32 %s12, %s19
      %p21 = scmp.eq.s32.totalorder %s20, 0
      %s23 = sadd.s32 %s22, 1
      %s24 = scalar_select %p21, %s22, %s23
      %p27 = pneg %p21
      %p28 = scmp.eq.s32.totalorder %s12, 1
      %p29 = por %p27, %p28
      %p30 = scmp.ne.s32.totalorder %s22, %s25
      %p31 = scmp.eq.s32.totalorder %s12, 0
      %p32 = por %p30, %p31
      %p33 = scmp.ne.s32.totalorder %s22, %s25
      %p34 = scmp.eq.s32.totalorder %s17, 1
      %p35 = por %p33, %p34
      %p36 = scmp.ne.s32.totalorder %s25, %s26
      %p37 = scmp.eq.s32.totalorder %s17, 0
      %p38 = por %p36, %p37
      %p39 = scmp.ne.s32.totalorder %s25, %s26
      %p40 = scmp.eq.s32.totalorder %s18, 1
      %p41 = por %p39, %p40
      %p43 = scmp.ne.s32.totalorder %s26, %s42
      %p44 = scmp.eq.s32.totalorder %s18, 0
      %p45 = por %p43, %p44
      %s47 = sadd.s32 %s46, 1
      %p50 = scmp.eq.s32.totalorder %s12, 1
      %p51 = scmp.ne.s32.totalorder %s46, %s48
      %p52 = scmp.eq.s32.totalorder %s12, 0
      %p53 = por %p51, %p52
      %p54 = scmp.ne.s32.totalorder %s46, %s48
      %p55 = scmp.eq.s32.totalorder %s17, 1
      %p56 = por %p54, %p55
      %p57 = scmp.ne.s32.totalorder %s48, %s49
      %p58 = scmp.eq.s32.totalorder %s17, 0
      %p59 = por %p57, %p58
      %p60 = scmp.ne.s32.totalorder %s48, %s49
      %p61 = scmp.eq.s32.totalorder %s18, 1
      %p62 = por %p60, %p61
      %p64 = scmp.ne.s32.totalorder %s49, %s63
      %p65 = scmp.eq.s32.totalorder %s18, 0
      %p66 = por %p64, %p65
      %s68 = sadd.s32 %s67, 1
      %p71 = scmp.eq.s32.totalorder %s12, 1
      %p72 = scmp.ne.s32.totalorder %s67, %s69
      %p73 = scmp.eq.s32.totalorder %s12, 0
      %p74 = por %p72, %p73
      %p75 = scmp.ne.s32.totalorder %s67, %s69
      %p76 = scmp.eq.s32.totalorder %s17, 1
      %p77 = por %p75, %p76
      %p78 = scmp.ne.s32.totalorder %s69, %s70
      %p79 = scmp.eq.s32.totalorder %s17, 0
      %p80 = por %p78, %p79
      %p81 = scmp.ne.s32.totalorder %s69, %s70
      %p82 = scmp.eq.s32.totalorder %s18, 1
      %p83 = por %p81, %p82
      %p85 = scmp.ne.s32.totalorder %s70, %s84
      %p86 = scmp.eq.s32.totalorder %s18, 0
      %p87 = por %p85, %p86
      %s88 = ssub.s32 %s12, %s19
      %p89 = scmp.eq.s32.totalorder %s88, 0
      %s91 = sadd.s32 %s90, 1
      %s92 = scalar_select %p89, %s90, %s91
      %p95 = pneg %p89
      %p96 = scmp.eq.s32.totalorder %s12, 1
      %p97 = por %p95, %p96
      %p98 = scmp.ne.s32.totalorder %s90, %s93
      %p99 = scmp.eq.s32.totalorder %s12, 0
      %p100 = por %p98, %p99
      %p101 = scmp.ne.s32.totalorder %s90, %s93
      %p102 = scmp.eq.s32.totalorder %s17, 1
      %p103 = por %p101, %p102
      %p104 = scmp.ne.s32.totalorder %s93, %s94
      %p105 = scmp.eq.s32.totalorder %s17, 0
      %p106 = por %p104, %p105
      %p107 = scmp.ne.s32.totalorder %s93, %s94
      %p108 = scmp.eq.s32.totalorder %s18, 1
      %p109 = por %p107, %p108
      %p111 = scmp.ne.s32.totalorder %s94, %s110
      %p112 = scmp.eq.s32.totalorder %s18, 0
      %p113 = por %p111, %p112
      %p114 = scmp.le.s32.totalorder 1, %s12
      %p115 = scmp.lt.s32.totalorder %s12, 3
      %p116 = pnand %p114, %p115
      %p117 = pneg %p116
      // Predicated region
      $region9: #{tpu_custom_call.1} parent=5 // pred_check
        _
      $region10: #{tpu_custom_call.1} parent=5 // pred_check_branch
        %119 = sbr.rel (%p116) target = $region12
      $region11: #{tpu_custom_call.1} parent=5 // pred_region
        %s120 = ssub.s32 %s12, 1
        // Predicated region
        $region13: #{tpu_custom_call.1} parent=11 // pred_check
          %p121 = pneg %p59
        $region14: #{tpu_custom_call.1} parent=11 // pred_check_branch
          %123 = sbr.rel (%p121) target = $region16
        $region15: #{tpu_custom_call.1} parent=11 // pred_region
          _
        $region16: #{tpu_custom_call.1} parent=11 // pred_fallthru
          _
        // Predicated region
        $region17: #{tpu_custom_call.1} parent=11 // pred_check
          %p124 = pneg %p80
        $region18: #{tpu_custom_call.1} parent=11 // pred_check_branch
          %126 = sbr.rel (%p124) target = $region20
        $region19: #{tpu_custom_call.1} parent=11 // pred_region
          _
        $region20: #{tpu_custom_call.1} parent=11 // pred_fallthru
          _
      $region12: #{tpu_custom_call.1} parent=5 // pred_fallthru
        _
      %p127 = scmp.lt.s32.totalorder %s12, 2
      // Predicated region
      $region21: #{tpu_custom_call.1} parent=5 // pred_check
        %p128 = pneg %p127
      $region22: #{tpu_custom_call.1} parent=5 // pred_check_branch
        %130 = sbr.rel (%p128) target = $region24
      $region23: #{tpu_custom_call.1} parent=5 // pred_region
        // Predicated region
        $region25: #{tpu_custom_call.1} parent=23 // pred_check
          %p131 = pneg %p32
        $region26: #{tpu_custom_call.1} parent=23 // pred_check_branch
          %133 = sbr.rel (%p131) target = $region28
        $region27: #{tpu_custom_call.1} parent=23 // pred_region
          %p134 = scmp.lt.s32.totalorder %s12, 1
          %s135 = scalar_select %p134, %s12, 1
          %s136 = smul.addr %s135, 3
          %s137 = smul.addr %s136, 4
          %s138 = scalar_lea.vmem %s0, %s137
        $region28: #{tpu_custom_call.1} parent=23 // pred_fallthru
          _
      $region24: #{tpu_custom_call.1} parent=5 // pred_fallthru
        _
      %p139 = scmp.le.s32.totalorder 1, %s12
      %p140 = scmp.lt.s32.totalorder %s12, 3
      %p141 = pnand %p139, %p140
      %p142 = pneg %p141
      // Predicated region
      $region29: #{tpu_custom_call.1} parent=5 // pred_check
        _
      $region30: #{tpu_custom_call.1} parent=5 // pred_check_branch
        %144 = sbr.rel (%p141) target = $region32
      $region31: #{tpu_custom_call.1} parent=5 // pred_region
        %s145 = ssub.s32 %s12, 1
        %p146 = scmp.lt.s32.totalorder %s17, 1
        %s147 = scalar_select %p146, %s17, 1
        %s148 = smul.addr %s147, 3
        %s149 = smul.addr %s148, 4
        %s150 = scalar_lea.vmem %s0, %s149
        %p151 = pneg %p38
        %p152 = pneg %p35
        %p153 = pneg %p59
        %p154 = pneg %p56
        %p155 = pneg %p80
        %p156 = pneg %p77
        %p157 = pneg %p106
        %p158 = pneg %p103
        %s159 = sand.u32 %s93, 1
        %s160 = scalar_lea.sflag [#allocation3], %s159
        %s161 = sand.u32 %s93, 1
        %s162 = smul.addr %s161, 24
        %s163 = scalar_lea.vmem [#allocation2], %s162
        %p164 = scmp.lt.s32.totalorder %s17, 1
        %s165 = scalar_select %p164, %s17, 1
        %s166 = smul.addr %s165, 3
        %s167 = smul.addr %s166, 4
        %s168 = scalar_lea.vmem %s0, %s167
        %v169 = vld [vmem:[%s2] sm:$0xff]
        %171 = vset.pattern.permute.xlu0 0
        %172 = vperm.xlu0 %171, %v169
        %v173 = vpop.permute.xlu0 %172
        %v175 = vld [vmem:[%s168] sm:$0xff]
        %v176 = vld [vmem:[%s168 + $0x8] sm:$0xf]
        %v177 = vld [vmem:[%s1] sm:$0xff]
        %v180 = vcombine.high %v175, %v175
        %vm181 = vcmask 31744
        %v183 = vsel %vm181, %v177, 0
        %vm185 = vcmask 1043456
        %v186 = vsel %vm185, %v175, 0
        %v188 = vsel %vm185, %v180, 0
        %v190 = vsel %vm185, %v176, 0
        %192 = vmatprep.subr.mxu0 %v188
        %193 = vmatpush1.msra.mxu0 %v186
        %194 = vmatprep.subr.mxu0 0.0
        %195 = vmatpush1.msra.mxu0 0.0
        %196 = vmatprep.subr.mxu0 0.0
        %197 = vmatpush1.msra.mxu0 0.0
        %198 = vmatprep.subr.mxu0 0.0
        %199 = vmatpush1.msra.mxu0 0.0
        %200 = vmatprep.subr.mxu0 0.0
        %201 = vmatpush1.msra.mxu0 0.0
        %202 = vmatprep.subr.mxu0 0.0
        %203 = vmatpush1.msra.mxu0 0.0
        %204 = vmatprep.subr.mxu0 0.0
        %205 = vmatpush1.msra.mxu0 0.0
        %206 = vmatprep.subr.mxu0 0.0
        %207 = vmatpush1.msra.mxu0 0.0
        %208 = vmatprep.subr.mxu0 0.0
        %209 = vmatpush1.msra.mxu0 0.0
        %210 = vmatprep.subr.mxu0 0.0
        %211 = vmatpush1.msra.mxu0 0.0
        %212 = vmatprep.subr.mxu0 0.0
        %213 = vmatpush1.msra.mxu0 0.0
        %214 = vmatprep.subr.mxu0 0.0
        %215 = vmatpush1.msra.mxu0 0.0
        %216 = vmatprep.subr.mxu0 0.0
        %217 = vmatpush1.msra.mxu0 0.0
        %218 = vmatprep.subr.mxu0 0.0
        %219 = vmatpush1.msra.mxu0 0.0
        %220 = vmatprep.subr.mxu0 0.0
        %221 = vmatpush1.msra.mxu0 0.0
        %222 = vmatprep.subr.mxu0 0.0
        %223 = vmatpush1.msra.mxu0 0.0
        %224 = vmatprep.subr.mxu0 0.0
        %225 = vmatpush1.msra.mxu0 0.0
        %226 = vmatprep.subr.mxu0 0.0
        %227 = vmatpush1.msra.mxu0 0.0
        %228 = vmatprep.subr.mxu0 0.0
        %229 = vmatpush1.msra.mxu0 0.0
        %230 = vmatprep.subr.mxu0 0.0
        %231 = vmatpush1.msra.mxu0 0.0
        %232 = vmatprep.subr.mxu0 0.0
        %233 = vmatpush1.msra.mxu0 0.0
        %234 = vmatprep.subr.mxu0 0.0
        %235 = vmatpush1.msra.mxu0 0.0
        %236 = vmatprep.subr.mxu0 0.0
        %237 = vmatpush1.msra.mxu0 0.0
        %238 = vmatprep.subr.mxu0 0.0
        %239 = vmatpush1.msra.mxu0 0.0
        %240 = vmatprep.subr.mxu0 0.0
        %241 = vmatpush1.msra.mxu0 0.0
        %242 = vmatprep.subr.mxu0 0.0
        %243 = vmatpush1.msra.mxu0 0.0
        %244 = vmatprep.subr.mxu0 0.0
        %245 = vmatpush1.msra.mxu0 0.0
        %246 = vmatprep.subr.mxu0 0.0
        %247 = vmatpush1.msra.mxu0 0.0
        %248 = vmatprep.subr.mxu0 0.0
        %249 = vmatpush1.msra.mxu0 0.0
        %250 = vmatprep.subr.mxu0 0.0
        %251 = vmatpush1.msra.mxu0 0.0
        %252 = vmatprep.subr.mxu0 0.0
        %253 = vmatpush1.msra.mxu0 0.0
        %254 = vmatprep.subr.mxu0 0.0
        %255 = vmatpush1.msra.mxu0 0.0
        %256 = vmatprep.mubr.f32.mxu0 0.0
        %257 = vmatmul.mubr.f32.gmra.mrb[0].mxu0 %v183
        %v258 = vpop.f32.mrb[0].mxu0
        %v259 = vadd.f32 0.0, %v258
        %v260 = vpop.f32.mrb[0].mxu0
        %v261 = vadd.f32 0.0, %v260
        %262 = vdwg.mxu0
        %263 = vmatprep.subr.mxu0 0.0
        %264 = vmatpush1.msra.mxu0 %v190
        %265 = vmatprep.subr.mxu0 0.0
        %266 = vmatpush1.msra.mxu0 0.0
        %267 = vmatprep.subr.mxu0 0.0
        %268 = vmatpush1.msra.mxu0 0.0
        %269 = vmatprep.subr.mxu0 0.0
        %270 = vmatpush1.msra.mxu0 0.0
        %271 = vmatprep.subr.mxu0 0.0
        %272 = vmatpush1.msra.mxu0 0.0
        %273 = vmatprep.subr.mxu0 0.0
        %274 = vmatpush1.msra.mxu0 0.0
        %275 = vmatprep.subr.mxu0 0.0
        %276 = vmatpush1.msra.mxu0 0.0
        %277 = vmatprep.subr.mxu0 0.0
        %278 = vmatpush1.msra.mxu0 0.0
        %279 = vmatprep.subr.mxu0 0.0
        %280 = vmatpush1.msra.mxu0 0.0
        %281 = vmatprep.subr.mxu0 0.0
        %282 = vmatpush1.msra.mxu0 0.0
        %283 = vmatprep.subr.mxu0 0.0
        %284 = vmatpush1.msra.mxu0 0.0
        %285 = vmatprep.subr.mxu0 0.0
        %286 = vmatpush1.msra.mxu0 0.0
        %287 = vmatprep.subr.mxu0 0.0
        %288 = vmatpush1.msra.mxu0 0.0
        %289 = vmatprep.subr.mxu0 0.0
        %290 = vmatpush1.msra.mxu0 0.0
        %291 = vmatprep.subr.mxu0 0.0
        %292 = vmatpush1.msra.mxu0 0.0
        %293 = vmatprep.subr.mxu0 0.0
        %294 = vmatpush1.msra.mxu0 0.0
        %295 = vmatprep.subr.mxu0 0.0
        %296 = vmatpush1.msra.mxu0 0.0
        %297 = vmatprep.subr.mxu0 0.0
        %298 = vmatpush1.msra.mxu0 0.0
        %299 = vmatprep.subr.mxu0 0.0
        %300 = vmatpush1.msra.mxu0 0.0
        %301 = vmatprep.subr.mxu0 0.0
        %302 = vmatpush1.msra.mxu0 0.0
        %303 = vmatprep.subr.mxu0 0.0
        %304 = vmatpush1.msra.mxu0 0.0
        %305 = vmatprep.subr.mxu0 0.0
        %306 = vmatpush1.msra.mxu0 0.0
        %307 = vmatprep.subr.mxu0 0.0
        %308 = vmatpush1.msra.mxu0 0.0
        %309 = vmatprep.subr.mxu0 0.0
        %310 = vmatpush1.msra.mxu0 0.0
        %311 = vmatprep.subr.mxu0 0.0
        %312 = vmatpush1.msra.mxu0 0.0
        %313 = vmatprep.subr.mxu0 0.0
        %314 = vmatpush1.msra.mxu0 0.0
        %315 = vmatprep.subr.mxu0 0.0
        %316 = vmatpush1.msra.mxu0 0.0
        %317 = vmatprep.subr.mxu0 0.0
        %318 = vmatpush1.msra.mxu0 0.0
        %319 = vmatprep.subr.mxu0 0.0
        %320 = vmatpush1.msra.mxu0 0.0
        %321 = vmatprep.subr.mxu0 0.0
        %322 = vmatpush1.msra.mxu0 0.0
        %323 = vmatprep.subr.mxu0 0.0
        %324 = vmatpush1.msra.mxu0 0.0
        %325 = vmatprep.subr.mxu0 0.0
        %326 = vmatpush1.msra.mxu0 0.0
        %327 = vmatprep.mubr.f32.mxu0 0.0
        %328 = vmatmul.mubr.f32.gmra.mrb[0].mxu0 %v183
        %v329 = vpop.f32.mrb[0].mxu0
        %v330 = vadd.f32 0.0, %v329
        %v331 = vpop.f32.mrb[0].mxu0
        %332 = vdwg.mxu0
        %v333 = vadd.f32 %v173, %v259
        %v334 = vadd.f32 %v173, %v261
        %v335 = vadd.f32 %v173, %v330
        %v336 = vld [vmem:[%s168] sm:$0xff]
        %v337 = vld [vmem:[%s168 + $0x8] sm:$0xf]
        %s338 = scalar_lea.vmem %s1, 8
        %v339 = vld [vmem:[%s338] sm:$0xff]
        %v342 = vcombine.high %v336, %v336
        %343 = vrot.lane.b32.xlu0 %v336, 127
        %v344 = vpop.permute.xlu0 %343
        %345 = vrot.lane.b32.xlu0 %v342, 127
        %v346 = vpop.permute.xlu0 %345
        %347 = vrot.lane.b32.xlu0 %v337, 127
        %v348 = vpop.permute.xlu0 %347
        %vm349 = vcmask 1039360
        %v350 = vsel %vm349, %v344, %v346
        %v351 = vsel %vm349, %v346, %v348
        %v353 = vsel %vm181, %v339, 0
        %v355 = vsel %vm185, %v350, 0
        %v357 = vsel %vm185, %v351, 0
        %v359 = vsel %vm185, %v348, 0
        %361 = vmatprep.subr.mxu0 %v357
        %362 = vmatpush1.msra.mxu0 %v355
        %363 = vmatprep.subr.mxu0 0.0
        %364 = vmatpush1.msra.mxu0 0.0
        %365 = vmatprep.subr.mxu0 0.0
        %366 = vmatpush1.msra.mxu0 0.0
        %367 = vmatprep.subr.mxu0 0.0
        %368 = vmatpush1.msra.mxu0 0.0
        %369 = vmatprep.subr.mxu0 0.0
        %370 = vmatpush1.msra.mxu0 0.0
        %371 = vmatprep.subr.mxu0 0.0
        %372 = vmatpush1.msra.mxu0 0.0
        %373 = vmatprep.subr.mxu0 0.0
        %374 = vmatpush1.msra.mxu0 0.0
        %375 = vmatprep.subr.mxu0 0.0
        %376 = vmatpush1.msra.mxu0 0.0
        %377 = vmatprep.subr.mxu0 0.0
        %378 = vmatpush1.msra.mxu0 0.0
        %379 = vmatprep.subr.mxu0 0.0
        %380 = vmatpush1.msra.mxu0 0.0
        %381 = vmatprep.subr.mxu0 0.0
        %382 = vmatpush1.msra.mxu0 0.0
        %383 = vmatprep.subr.mxu0 0.0
        %384 = vmatpush1.msra.mxu0 0.0
        %385 = vmatprep.subr.mxu0 0.0
        %386 = vmatpush1.msra.mxu0 0.0
        %387 = vmatprep.subr.mxu0 0.0
        %388 = vmatpush1.msra.mxu0 0.0
        %389 = vmatprep.subr.mxu0 0.0
        %390 = vmatpush1.msra.mxu0 0.0
        %391 = vmatprep.subr.mxu0 0.0
        %392 = vmatpush1.msra.mxu0 0.0
        %393 = vmatprep.subr.mxu0 0.0
        %394 = vmatpush1.msra.mxu0 0.0
        %395 = vmatprep.subr.mxu0 0.0
        %396 = vmatpush1.msra.mxu0 0.0
        %397 = vmatprep.subr.mxu0 0.0
        %398 = vmatpush1.msra.mxu0 0.0
        %399 = vmatprep.subr.mxu0 0.0
        %400 = vmatpush1.msra.mxu0 0.0
        %401 = vmatprep.subr.mxu0 0.0
        %402 = vmatpush1.msra.mxu0 0.0
        %403 = vmatprep.subr.mxu0 0.0
        %404 = vmatpush1.msra.mxu0 0.0
        %405 = vmatprep.subr.mxu0 0.0
        %406 = vmatpush1.msra.mxu0 0.0
        %407 = vmatprep.subr.mxu0 0.0
        %408 = vmatpush1.msra.mxu0 0.0
        %409 = vmatprep.subr.mxu0 0.0
        %410 = vmatpush1.msra.mxu0 0.0
        %411 = vmatprep.subr.mxu0 0.0
        %412 = vmatpush1.msra.mxu0 0.0
        %413 = vmatprep.subr.mxu0 0.0
        %414 = vmatpush1.msra.mxu0 0.0
        %415 = vmatprep.subr.mxu0 0.0
        %416 = vmatpush1.msra.mxu0 0.0
        %417 = vmatprep.subr.mxu0 0.0
        %418 = vmatpush1.msra.mxu0 0.0
        %419 = vmatprep.subr.mxu0 0.0
        %420 = vmatpush1.msra.mxu0 0.0
        %421 = vmatprep.subr.mxu0 0.0
        %422 = vmatpush1.msra.mxu0 0.0
        %423 = vmatprep.subr.mxu0 0.0
        %424 = vmatpush1.msra.mxu0 0.0
        %425 = vmatprep.mubr.f32.mxu0 0.0
        %426 = vmatmul.mubr.f32.gmra.mrb[0].mxu0 %v353
        %v427 = vpop.f32.mrb[0].mxu0
        %v428 = vadd.f32 0.0, %v427
        %v429 = vpop.f32.mrb[0].mxu0
        %v430 = vadd.f32 0.0, %v429
        %431 = vdwg.mxu0
        %432 = vmatprep.subr.mxu0 0.0
        %433 = vmatpush1.msra.mxu0 %v359
        %434 = vmatprep.subr.mxu0 0.0
        %435 = vmatpush1.msra.mxu0 0.0
        %436 = vmatprep.subr.mxu0 0.0
        %437 = vmatpush1.msra.mxu0 0.0
        %438 = vmatprep.subr.mxu0 0.0
        %439 = vmatpush1.msra.mxu0 0.0
        %440 = vmatprep.subr.mxu0 0.0
        %441 = vmatpush1.msra.mxu0 0.0
        %442 = vmatprep.subr.mxu0 0.0
        %443 = vmatpush1.msra.mxu0 0.0
        %444 = vmatprep.subr.mxu0 0.0
        %445 = vmatpush1.msra.mxu0 0.0
        %446 = vmatprep.subr.mxu0 0.0
        %447 = vmatpush1.msra.mxu0 0.0
        %448 = vmatprep.subr.mxu0 0.0
        %449 = vmatpush1.msra.mxu0 0.0
        %450 = vmatprep.subr.mxu0 0.0
        %451 = vmatpush1.msra.mxu0 0.0
        %452 = vmatprep.subr.mxu0 0.0
        %453 = vmatpush1.msra.mxu0 0.0
        %454 = vmatprep.subr.mxu0 0.0
        %455 = vmatpush1.msra.mxu0 0.0
        %456 = vmatprep.subr.mxu0 0.0
        %457 = vmatpush1.msra.mxu0 0.0
        %458 = vmatprep.subr.mxu0 0.0
        %459 = vmatpush1.msra.mxu0 0.0
        %460 = vmatprep.subr.mxu0 0.0
        %461 = vmatpush1.msra.mxu0 0.0
        %462 = vmatprep.subr.mxu0 0.0
        %463 = vmatpush1.msra.mxu0 0.0
        %464 = vmatprep.subr.mxu0 0.0
        %465 = vmatpush1.msra.mxu0 0.0
        %466 = vmatprep.subr.mxu0 0.0
        %467 = vmatpush1.msra.mxu0 0.0
        %468 = vmatprep.subr.mxu0 0.0
        %469 = vmatpush1.msra.mxu0 0.0
        %470 = vmatprep.subr.mxu0 0.0
        %471 = vmatpush1.msra.mxu0 0.0
        %472 = vmatprep.subr.mxu0 0.0
        %473 = vmatpush1.msra.mxu0 0.0
        %474 = vmatprep.subr.mxu0 0.0
        %475 = vmatpush1.msra.mxu0 0.0
        %476 = vmatprep.subr.mxu0 0.0
        %477 = vmatpush1.msra.mxu0 0.0
        %478 = vmatprep.subr.mxu0 0.0
        %479 = vmatpush1.msra.mxu0 0.0
        %480 = vmatprep.subr.mxu0 0.0
        %481 = vmatpush1.msra.mxu0 0.0
        %482 = vmatprep.subr.mxu0 0.0
        %483 = vmatpush1.msra.mxu0 0.0
        %484 = vmatprep.subr.mxu0 0.0
        %485 = vmatpush1.msra.mxu0 0.0
        %486 = vmatprep.subr.mxu0 0.0
        %487 = vmatpush1.msra.mxu0 0.0
        %488 = vmatprep.subr.mxu0 0.0
        %489 = vmatpush1.msra.mxu0 0.0
        %490 = vmatprep.subr.mxu0 0.0
        %491 = vmatpush1.msra.mxu0 0.0
        %492 = vmatprep.subr.mxu0 0.0
        %493 = vmatpush1.msra.mxu0 0.0
        %494 = vmatprep.subr.mxu0 0.0
        %495 = vmatpush1.msra.mxu0 0.0
        %496 = vmatprep.mubr.f32.mxu0 0.0
        %497 = vmatmul.mubr.f32.gmra.mrb[0].mxu0 %v353
        %v498 = vpop.f32.mrb[0].mxu0
        %v499 = vadd.f32 0.0, %v498
        %v500 = vpop.f32.mrb[0].mxu0
        %501 = vdwg.mxu0
        %v502 = vadd.f32 %v333, %v428
        %v503 = vadd.f32 %v334, %v430
        %v504 = vadd.f32 %v335, %v499
        %v505 = vld [vmem:[%s168] sm:$0xff]
        %v506 = vld [vmem:[%s168 + $0x8] sm:$0xf]
        %s507 = scalar_lea.vmem %s1, 16
        %v508 = vld [vmem:[%s507] sm:$0xff]
        %v511 = vcombine.high %v505, %v505
        %512 = vrot.lane.b32.xlu0 %v505, 126
        %v513 = vpop.permute.xlu0 %512
        %514 = vrot.lane.b32.xlu0 %v511, 126
        %v515 = vpop.permute.xlu0 %514
        %516 = vrot.lane.b32.xlu0 %v506, 126
        %v517 = vpop.permute.xlu0 %516
        %vm518 = vcmask 1031168
        %v519 = vsel %vm518, %v513, %v515
        %v520 = vsel %vm518, %v515, %v517
        %v522 = vsel %vm181, %v508, 0
        %v524 = vsel %vm185, %v519, 0
        %v526 = vsel %vm185, %v520, 0
        %v528 = vsel %vm185, %v517, 0
        %530 = vmatprep.subr.mxu0 %v526
        %531 = vmatpush1.msra.mxu0 %v524
        %532 = vmatprep.subr.mxu0 0.0
        %533 = vmatpush1.msra.mxu0 0.0
        %534 = vmatprep.subr.mxu0 0.0
        %535 = vmatpush1.msra.mxu0 0.0
        %536 = vmatprep.subr.mxu0 0.0
        %537 = vmatpush1.msra.mxu0 0.0
        %538 = vmatprep.subr.mxu0 0.0
        %539 = vmatpush1.msra.mxu0 0.0
        %540 = vmatprep.subr.mxu0 0.0
        %541 = vmatpush1.msra.mxu0 0.0
        %542 = vmatprep.subr.mxu0 0.0
        %543 = vmatpush1.msra.mxu0 0.0
        %544 = vmatprep.subr.mxu0 0.0
        %545 = vmatpush1.msra.mxu0 0.0
        %546 = vmatprep.subr.mxu0 0.0
        %547 = vmatpush1.msra.mxu0 0.0
        %548 = vmatprep.subr.mxu0 0.0
        %549 = vmatpush1.msra.mxu0 0.0
        %550 = vmatprep.subr.mxu0 0.0
        %551 = vmatpush1.msra.mxu0 0.0
        %552 = vmatprep.subr.mxu0 0.0
        %553 = vmatpush1.msra.mxu0 0.0
        %554 = vmatprep.subr.mxu0 0.0
        %555 = vmatpush1.msra.mxu0 0.0
        %556 = vmatprep.subr.mxu0 0.0
        %557 = vmatpush1.msra.mxu0 0.0
        %558 = vmatprep.subr.mxu0 0.0
        %559 = vmatpush1.msra.mxu0 0.0
        %560 = vmatprep.subr.mxu0 0.0
        %561 = vmatpush1.msra.mxu0 0.0
        %562 = vmatprep.subr.mxu0 0.0
        %563 = vmatpush1.msra.mxu0 0.0
        %564 = vmatprep.subr.mxu0 0.0
        %565 = vmatpush1.msra.mxu0 0.0
        %566 = vmatprep.subr.mxu0 0.0
        %567 = vmatpush1.msra.mxu0 0.0
        %568 = vmatprep.subr.mxu0 0.0
        %569 = vmatpush1.msra.mxu0 0.0
        %570 = vmatprep.subr.mxu0 0.0
        %571 = vmatpush1.msra.mxu0 0.0
        %572 = vmatprep.subr.mxu0 0.0
        %573 = vmatpush1.msra.mxu0 0.0
        %574 = vmatprep.subr.mxu0 0.0
        %575 = vmatpush1.msra.mxu0 0.0
        %576 = vmatprep.subr.mxu0 0.0
        %577 = vmatpush1.msra.mxu0 0.0
        %578 = vmatprep.subr.mxu0 0.0
        %579 = vmatpush1.msra.mxu0 0.0
        %580 = vmatprep.subr.mxu0 0.0
        %581 = vmatpush1.msra.mxu0 0.0
        %582 = vmatprep.subr.mxu0 0.0
        %583 = vmatpush1.msra.mxu0 0.0
        %584 = vmatprep.subr.mxu0 0.0
        %585 = vmatpush1.msra.mxu0 0.0
        %586 = vmatprep.subr.mxu0 0.0
        %587 = vmatpush1.msra.mxu0 0.0
        %588 = vmatprep.subr.mxu0 0.0
        %589 = vmatpush1.msra.mxu0 0.0
        %590 = vmatprep.subr.mxu0 0.0
        %591 = vmatpush1.msra.mxu0 0.0
        %592 = vmatprep.subr.mxu0 0.0
        %593 = vmatpush1.msra.mxu0 0.0
        %594 = vmatprep.mubr.f32.mxu0 0.0
        %595 = vmatmul.mubr.f32.gmra.mrb[0].mxu0 %v522
        %v596 = vpop.f32.mrb[0].mxu0
        %v597 = vadd.f32 0.0, %v596
        %v598 = vpop.f32.mrb[0].mxu0
        %v599 = vadd.f32 0.0, %v598
        %600 = vdwg.mxu0
        %601 = vmatprep.subr.mxu0 0.0
        %602 = vmatpush1.msra.mxu0 %v528
        %603 = vmatprep.subr.mxu0 0.0
        %604 = vmatpush1.msra.mxu0 0.0
        %605 = vmatprep.subr.mxu0 0.0
        %606 = vmatpush1.msra.mxu0 0.0
        %607 = vmatprep.subr.mxu0 0.0
        %608 = vmatpush1.msra.mxu0 0.0
        %609 = vmatprep.subr.mxu0 0.0
        %610 = vmatpush1.msra.mxu0 0.0
        %611 = vmatprep.subr.mxu0 0.0
        %612 = vmatpush1.msra.mxu0 0.0
        %613 = vmatprep.subr.mxu0 0.0
        %614 = vmatpush1.msra.mxu0 0.0
        %615 = vmatprep.subr.mxu0 0.0
        %616 = vmatpush1.msra.mxu0 0.0
        %617 = vmatprep.subr.mxu0 0.0
        %618 = vmatpush1.msra.mxu0 0.0
        %619 = vmatprep.subr.mxu0 0.0
        %620 = vmatpush1.msra.mxu0 0.0
        %621 = vmatprep.subr.mxu0 0.0
        %622 = vmatpush1.msra.mxu0 0.0
        %623 = vmatprep.subr.mxu0 0.0
        %624 = vmatpush1.msra.mxu0 0.0
        %625 = vmatprep.subr.mxu0 0.0
        %626 = vmatpush1.msra.mxu0 0.0
        %627 = vmatprep.subr.mxu0 0.0
        %628 = vmatpush1.msra.mxu0 0.0
        %629 = vmatprep.subr.mxu0 0.0
        %630 = vmatpush1.msra.mxu0 0.0
        %631 = vmatprep.subr.mxu0 0.0
        %632 = vmatpush1.msra.mxu0 0.0
        %633 = vmatprep.subr.mxu0 0.0
        %634 = vmatpush1.msra.mxu0 0.0
        %635 = vmatprep.subr.mxu0 0.0
        %636 = vmatpush1.msra.mxu0 0.0
        %637 = vmatprep.subr.mxu0 0.0
        %638 = vmatpush1.msra.mxu0 0.0
        %639 = vmatprep.subr.mxu0 0.0
        %640 = vmatpush1.msra.mxu0 0.0
        %641 = vmatprep.subr.mxu0 0.0
        %642 = vmatpush1.msra.mxu0 0.0
        %643 = vmatprep.subr.mxu0 0.0
        %644 = vmatpush1.msra.mxu0 0.0
        %645 = vmatprep.subr.mxu0 0.0
        %646 = vmatpush1.msra.mxu0 0.0
        %647 = vmatprep.subr.mxu0 0.0
        %648 = vmatpush1.msra.mxu0 0.0
        %649 = vmatprep.subr.mxu0 0.0
        %650 = vmatpush1.msra.mxu0 0.0
        %651 = vmatprep.subr.mxu0 0.0
        %652 = vmatpush1.msra.mxu0 0.0
        %653 = vmatprep.subr.mxu0 0.0
        %654 = vmatpush1.msra.mxu0 0.0
        %655 = vmatprep.subr.mxu0 0.0
        %656 = vmatpush1.msra.mxu0 0.0
        %657 = vmatprep.subr.mxu0 0.0
        %658 = vmatpush1.msra.mxu0 0.0
        %659 = vmatprep.subr.mxu0 0.0
        %660 = vmatpush1.msra.mxu0 0.0
        %661 = vmatprep.subr.mxu0 0.0
        %662 = vmatpush1.msra.mxu0 0.0
        %663 = vmatprep.subr.mxu0 0.0
        %664 = vmatpush1.msra.mxu0 0.0
        %665 = vmatprep.mubr.f32.mxu0 0.0
        %666 = vmatmul.mubr.f32.gmra.mrb[0].mxu0 %v522
        %v667 = vpop.f32.mrb[0].mxu0
        %v668 = vadd.f32 0.0, %v667
        %v669 = vpop.f32.mrb[0].mxu0
        %670 = vdwg.mxu0
        %v671 = vadd.f32 %v502, %v597
        %v672 = vadd.f32 %v503, %v599
        %v673 = vadd.f32 %v504, %v668
        %v674 = vld [vmem:[%s168] sm:$0xff]
        %v675 = vld [vmem:[%s168 + $0x8] sm:$0xf]
        %s676 = scalar_lea.vmem %s1, 24
        %v677 = vld [vmem:[%s676] sm:$0xff]
        %v680 = vcombine.high %v674, %v674
        %681 = vrot.lane.b32.xlu0 %v674, 110
        %v682 = vpop.permute.xlu0 %681
        %683 = vrot.lane.b32.xlu0 %v680, 110
        %v684 = vpop.permute.xlu0 %683
        %685 = vrot.lane.b32.xlu0 %v675, 110
        %v686 = vpop.permute.xlu0 %685
        %vm687 = vcmask 900096
        %v688 = vsel %vm687, %v682, %v684
        %v689 = vsel %vm687, %v684, %v686
        %v691 = vsel %vm181, %v677, 0
        %v693 = vsel %vm185, %v688, 0
        %v695 = vsel %vm185, %v689, 0
        %v697 = vsel %vm185, %v686, 0
        %699 = vmatprep.subr.mxu0 %v695
        %700 = vmatpush1.msra.mxu0 %v693
        %701 = vmatprep.subr.mxu0 0.0
        %702 = vmatpush1.msra.mxu0 0.0
        %703 = vmatprep.subr.mxu0 0.0
        %704 = vmatpush1.msra.mxu0 0.0
        %705 = vmatprep.subr.mxu0 0.0
        %706 = vmatpush1.msra.mxu0 0.0
        %707 = vmatprep.subr.mxu0 0.0
        %708 = vmatpush1.msra.mxu0 0.0
        %709 = vmatprep.subr.mxu0 0.0
        %710 = vmatpush1.msra.mxu0 0.0
        %711 = vmatprep.subr.mxu0 0.0
        %712 = vmatpush1.msra.mxu0 0.0
        %713 = vmatprep.subr.mxu0 0.0
        %714 = vmatpush1.msra.mxu0 0.0
        %715 = vmatprep.subr.mxu0 0.0
        %716 = vmatpush1.msra.mxu0 0.0
        %717 = vmatprep.subr.mxu0 0.0
        %718 = vmatpush1.msra.mxu0 0.0
        %719 = vmatprep.subr.mxu0 0.0
        %720 = vmatpush1.msra.mxu0 0.0
        %721 = vmatprep.subr.mxu0 0.0
        %722 = vmatpush1.msra.mxu0 0.0
        %723 = vmatprep.subr.mxu0 0.0
        %724 = vmatpush1.msra.mxu0 0.0
        %725 = vmatprep.subr.mxu0 0.0
        %726 = vmatpush1.msra.mxu0 0.0
        %727 = vmatprep.subr.mxu0 0.0
        %728 = vmatpush1.msra.mxu0 0.0
        %729 = vmatprep.subr.mxu0 0.0
        %730 = vmatpush1.msra.mxu0 0.0
        %731 = vmatprep.subr.mxu0 0.0
        %732 = vmatpush1.msra.mxu0 0.0
        %733 = vmatprep.subr.mxu0 0.0
        %734 = vmatpush1.msra.mxu0 0.0
        %735 = vmatprep.subr.mxu0 0.0
        %736 = vmatpush1.msra.mxu0 0.0
        %737 = vmatprep.subr.mxu0 0.0
        %738 = vmatpush1.msra.mxu0 0.0
        %739 = vmatprep.subr.mxu0 0.0
        %740 = vmatpush1.msra.mxu0 0.0
        %741 = vmatprep.subr.mxu0 0.0
        %742 = vmatpush1.msra.mxu0 0.0
        %743 = vmatprep.subr.mxu0 0.0
        %744 = vmatpush1.msra.mxu0 0.0
        %745 = vmatprep.subr.mxu0 0.0
        %746 = vmatpush1.msra.mxu0 0.0
        %747 = vmatprep.subr.mxu0 0.0
        %748 = vmatpush1.msra.mxu0 0.0
        %749 = vmatprep.subr.mxu0 0.0
        %750 = vmatpush1.msra.mxu0 0.0
        %751 = vmatprep.subr.mxu0 0.0
        %752 = vmatpush1.msra.mxu0 0.0
        %753 = vmatprep.subr.mxu0 0.0
        %754 = vmatpush1.msra.mxu0 0.0
        %755 = vmatprep.subr.mxu0 0.0
        %756 = vmatpush1.msra.mxu0 0.0
        %757 = vmatprep.subr.mxu0 0.0
        %758 = vmatpush1.msra.mxu0 0.0
        %759 = vmatprep.subr.mxu0 0.0
        %760 = vmatpush1.msra.mxu0 0.0
        %761 = vmatprep.subr.mxu0 0.0
        %762 = vmatpush1.msra.mxu0 0.0
        %763 = vmatprep.mubr.f32.mxu0 0.0
        %764 = vmatmul.mubr.f32.gmra.mrb[0].mxu0 %v691
        %v765 = vpop.f32.mrb[0].mxu0
        %v766 = vadd.f32 0.0, %v765
        %v767 = vpop.f32.mrb[0].mxu0
        %v768 = vadd.f32 0.0, %v767
        %769 = vdwg.mxu0
        %770 = vmatprep.subr.mxu0 0.0
        %771 = vmatpush1.msra.mxu0 %v697
        %772 = vmatprep.subr.mxu0 0.0
        %773 = vmatpush1.msra.mxu0 0.0
        %774 = vmatprep.subr.mxu0 0.0
        %775 = vmatpush1.msra.mxu0 0.0
        %776 = vmatprep.subr.mxu0 0.0
        %777 = vmatpush1.msra.mxu0 0.0
        %778 = vmatprep.subr.mxu0 0.0
        %779 = vmatpush1.msra.mxu0 0.0
        %780 = vmatprep.subr.mxu0 0.0
        %781 = vmatpush1.msra.mxu0 0.0
        %782 = vmatprep.subr.mxu0 0.0
        %783 = vmatpush1.msra.mxu0 0.0
        %784 = vmatprep.subr.mxu0 0.0
        %785 = vmatpush1.msra.mxu0 0.0
        %786 = vmatprep.subr.mxu0 0.0
        %787 = vmatpush1.msra.mxu0 0.0
        %788 = vmatprep.subr.mxu0 0.0
        %789 = vmatpush1.msra.mxu0 0.0
        %790 = vmatprep.subr.mxu0 0.0
        %791 = vmatpush1.msra.mxu0 0.0
        %792 = vmatprep.subr.mxu0 0.0
        %793 = vmatpush1.msra.mxu0 0.0
        %794 = vmatprep.subr.mxu0 0.0
        %795 = vmatpush1.msra.mxu0 0.0
        %796 = vmatprep.subr.mxu0 0.0
        %797 = vmatpush1.msra.mxu0 0.0
        %798 = vmatprep.subr.mxu0 0.0
        %799 = vmatpush1.msra.mxu0 0.0
        %800 = vmatprep.subr.mxu0 0.0
        %801 = vmatpush1.msra.mxu0 0.0
        %802 = vmatprep.subr.mxu0 0.0
        %803 = vmatpush1.msra.mxu0 0.0
        %804 = vmatprep.subr.mxu0 0.0
        %805 = vmatpush1.msra.mxu0 0.0
        %806 = vmatprep.subr.mxu0 0.0
        %807 = vmatpush1.msra.mxu0 0.0
        %808 = vmatprep.subr.mxu0 0.0
        %809 = vmatpush1.msra.mxu0 0.0
        %810 = vmatprep.subr.mxu0 0.0
        %811 = vmatpush1.msra.mxu0 0.0
        %812 = vmatprep.subr.mxu0 0.0
        %813 = vmatpush1.msra.mxu0 0.0
        %814 = vmatprep.subr.mxu0 0.0
        %815 = vmatpush1.msra.mxu0 0.0
        %816 = vmatprep.subr.mxu0 0.0
        %817 = vmatpush1.msra.mxu0 0.0
        %818 = vmatprep.subr.mxu0 0.0
        %819 = vmatpush1.msra.mxu0 0.0
        %820 = vmatprep.subr.mxu0 0.0
        %821 = vmatpush1.msra.mxu0 0.0
        %822 = vmatprep.subr.mxu0 0.0
        %823 = vmatpush1.msra.mxu0 0.0
        %824 = vmatprep.subr.mxu0 0.0
        %825 = vmatpush1.msra.mxu0 0.0
        %826 = vmatprep.subr.mxu0 0.0
        %827 = vmatpush1.msra.mxu0 0.0
        %828 = vmatprep.subr.mxu0 0.0
        %829 = vmatpush1.msra.mxu0 0.0
        %830 = vmatprep.subr.mxu0 0.0
        %831 = vmatpush1.msra.mxu0 0.0
        %832 = vmatprep.subr.mxu0 0.0
        %833 = vmatpush1.msra.mxu0 0.0
        %834 = vmatprep.mubr.f32.mxu0 0.0
        %835 = vmatmul.mubr.f32.gmra.mrb[0].mxu0 %v691
        %v836 = vpop.f32.mrb[0].mxu0
        %v837 = vadd.f32 0.0, %v836
        %v838 = vpop.f32.mrb[0].mxu0
        %839 = vdwg.mxu0
        %v840 = vadd.f32 %v671, %v766
        %v841 = vadd.f32 %v672, %v768
        %v842 = vadd.f32 %v673, %v837
        %v843 = vld [vmem:[%s168] sm:$0xff]
        %v844 = vld [vmem:[%s168 + $0x8] sm:$0xf]
        %s845 = scalar_lea.vmem %s1, 32
        %v846 = vld [vmem:[%s845] sm:$0xff]
        %v849 = vcombine.high %v843, %v843
        %850 = vrot.lane.b32.xlu0 %v843, 109
        %v851 = vpop.permute.xlu0 %850
        %852 = vrot.lane.b32.xlu0 %v849, 109
        %v853 = vpop.permute.xlu0 %852
        %854 = vrot.lane.b32.xlu0 %v844, 109
        %v855 = vpop.permute.xlu0 %854
        %vm856 = vcmask 891904
        %v857 = vsel %vm856, %v851, %v853
        %v858 = vsel %vm856, %v853, %v855
        %v860 = vsel %vm181, %v846, 0
        %v862 = vsel %vm185, %v857, 0
        %v864 = vsel %vm185, %v858, 0
        %v866 = vsel %vm185, %v855, 0
        %868 = vmatprep.subr.mxu0 %v864
        %869 = vmatpush1.msra.mxu0 %v862
        %870 = vmatprep.subr.mxu0 0.0
        %871 = vmatpush1.msra.mxu0 0.0
        %872 = vmatprep.subr.mxu0 0.0
        %873 = vmatpush1.msra.mxu0 0.0
        %874 = vmatprep.subr.mxu0 0.0
        %875 = vmatpush1.msra.mxu0 0.0
        %876 = vmatprep.subr.mxu0 0.0
        %877 = vmatpush1.msra.mxu0 0.0
        %878 = vmatprep.subr.mxu0 0.0
        %879 = vmatpush1.msra.mxu0 0.0
        %880 = vmatprep.subr.mxu0 0.0
        %881 = vmatpush1.msra.mxu0 0.0
        %882 = vmatprep.subr.mxu0 0.0
        %883 = vmatpush1.msra.mxu0 0.0
        %884 = vmatprep.subr.mxu0 0.0
        %885 = vmatpush1.msra.mxu0 0.0
        %886 = vmatprep.subr.mxu0 0.0
        %887 = vmatpush1.msra.mxu0 0.0
        %888 = vmatprep.subr.mxu0 0.0
        %889 = vmatpush1.msra.mxu0 0.0
        %890 = vmatprep.subr.mxu0 0.0
        %891 = vmatpush1.msra.mxu0 0.0
        %892 = vmatprep.subr.mxu0 0.0
        %893 = vmatpush1.msra.mxu0 0.0
        %894 = vmatprep.subr.mxu0 0.0
        %895 = vmatpush1.msra.mxu0 0.0
        %896 = vmatprep.subr.mxu0 0.0
        %897 = vmatpush1.msra.mxu0 0.0
        %898 = vmatprep.subr.mxu0 0.0
        %899 = vmatpush1.msra.mxu0 0.0
        %900 = vmatprep.subr.mxu0 0.0
        %901 = vmatpush1.msra.mxu0 0.0
        %902 = vmatprep.subr.mxu0 0.0
        %903 = vmatpush1.msra.mxu0 0.0
        %904 = vmatprep.subr.mxu0 0.0
        %905 = vmatpush1.msra.mxu0 0.0
        %906 = vmatprep.subr.mxu0 0.0
        %907 = vmatpush1.msra.mxu0 0.0
        %908 = vmatprep.subr.mxu0 0.0
        %909 = vmatpush1.msra.mxu0 0.0
        %910 = vmatprep.subr.mxu0 0.0
        %911 = vmatpush1.msra.mxu0 0.0
        %912 = vmatprep.subr.mxu0 0.0
        %913 = vmatpush1.msra.mxu0 0.0
        %914 = vmatprep.subr.mxu0 0.0
        %915 = vmatpush1.msra.mxu0 0.0
        %916 = vmatprep.subr.mxu0 0.0
        %917 = vmatpush1.msra.mxu0 0.0
        %918 = vmatprep.subr.mxu0 0.0
        %919 = vmatpush1.msra.mxu0 0.0
        %920 = vmatprep.subr.mxu0 0.0
        %921 = vmatpush1.msra.mxu0 0.0
        %922 = vmatprep.subr.mxu0 0.0
        %923 = vmatpush1.msra.mxu0 0.0
        %924 = vmatprep.subr.mxu0 0.0
        %925 = vmatpush1.msra.mxu0 0.0
        %926 = vmatprep.subr.mxu0 0.0
        %927 = vmatpush1.msra.mxu0 0.0
        %928 = vmatprep.subr.mxu0 0.0
        %929 = vmatpush1.msra.mxu0 0.0
        %930 = vmatprep.subr.mxu0 0.0
        %931 = vmatpush1.msra.mxu0 0.0
        %932 = vmatprep.mubr.f32.mxu0 0.0
        %933 = vmatmul.mubr.f32.gmra.mrb[0].mxu0 %v860
        %v934 = vpop.f32.mrb[0].mxu0
        %v935 = vadd.f32 0.0, %v934
        %v936 = vpop.f32.mrb[0].mxu0
        %v937 = vadd.f32 0.0, %v936
        %938 = vdwg.mxu0
        %939 = vmatprep.subr.mxu0 0.0
        %940 = vmatpush1.msra.mxu0 %v866
        %941 = vmatprep.subr.mxu0 0.0
        %942 = vmatpush1.msra.mxu0 0.0
        %943 = vmatprep.subr.mxu0 0.0
        %944 = vmatpush1.msra.mxu0 0.0
        %945 = vmatprep.subr.mxu0 0.0
        %946 = vmatpush1.msra.mxu0 0.0
        %947 = vmatprep.subr.mxu0 0.0
        %948 = vmatpush1.msra.mxu0 0.0
        %949 = vmatprep.subr.mxu0 0.0
        %950 = vmatpush1.msra.mxu0 0.0
        %951 = vmatprep.subr.mxu0 0.0
        %952 = vmatpush1.msra.mxu0 0.0
        %953 = vmatprep.subr.mxu0 0.0
        %954 = vmatpush1.msra.mxu0 0.0
        %955 = vmatprep.subr.mxu0 0.0
        %956 = vmatpush1.msra.mxu0 0.0
        %957 = vmatprep.subr.mxu0 0.0
        %958 = vmatpush1.msra.mxu0 0.0
        %959 = vmatprep.subr.mxu0 0.0
        %960 = vmatpush1.msra.mxu0 0.0
        %961 = vmatprep.subr.mxu0 0.0
        %962 = vmatpush1.msra.mxu0 0.0
        %963 = vmatprep.subr.mxu0 0.0
        %964 = vmatpush1.msra.mxu0 0.0
        %965 = vmatprep.subr.mxu0 0.0
        %966 = vmatpush1.msra.mxu0 0.0
        %967 = vmatprep.subr.mxu0 0.0
        %968 = vmatpush1.msra.mxu0 0.0
        %969 = vmatprep.subr.mxu0 0.0
        %970 = vmatpush1.msra.mxu0 0.0
        %971 = vmatprep.subr.mxu0 0.0
        %972 = vmatpush1.msra.mxu0 0.0
        %973 = vmatprep.subr.mxu0 0.0
        %974 = vmatpush1.msra.mxu0 0.0
        %975 = vmatprep.subr.mxu0 0.0
        %976 = vmatpush1.msra.mxu0 0.0
        %977 = vmatprep.subr.mxu0 0.0
        %978 = vmatpush1.msra.mxu0 0.0
        %979 = vmatprep.subr.mxu0 0.0
        %980 = vmatpush1.msra.mxu0 0.0
        %981 = vmatprep.subr.mxu0 0.0
        %982 = vmatpush1.msra.mxu0 0.0
        %983 = vmatprep.subr.mxu0 0.0
        %984 = vmatpush1.msra.mxu0 0.0
        %985 = vmatprep.subr.mxu0 0.0
        %986 = vmatpush1.msra.mxu0 0.0
        %987 = vmatprep.subr.mxu0 0.0
        %988 = vmatpush1.msra.mxu0 0.0
        %989 = vmatprep.subr.mxu0 0.0
        %990 = vmatpush1.msra.mxu0 0.0
        %991 = vmatprep.subr.mxu0 0.0
        %992 = vmatpush1.msra.mxu0 0.0
        %993 = vmatprep.subr.mxu0 0.0
        %994 = vmatpush1.msra.mxu0 0.0
        %995 = vmatprep.subr.mxu0 0.0
        %996 = vmatpush1.msra.mxu0 0.0
        %997 = vmatprep.subr.mxu0 0.0
        %998 = vmatpush1.msra.mxu0 0.0
        %999 = vmatprep.subr.mxu0 0.0
        %1000 = vmatpush1.msra.mxu0 0.0
        %1001 = vmatprep.subr.mxu0 0.0
        %1002 = vmatpush1.msra.mxu0 0.0
        %1003 = vmatprep.mubr.f32.mxu0 0.0
        %1004 = vmatmul.mubr.f32.gmra.mrb[0].mxu0 %v860
        %v1005 = vpop.f32.mrb[0].mxu0
        %v1006 = vadd.f32 0.0, %v1005
        %v1007 = vpop.f32.mrb[0].mxu0
        %1008 = vdwg.mxu0
        %v1009 = vadd.f32 %v840, %v935
        %v1010 = vadd.f32 %v841, %v937
        %v1011 = vadd.f32 %v842, %v1006
        %v1012 = vld [vmem:[%s168] sm:$0xff]
        %v1013 = vld [vmem:[%s168 + $0x8] sm:$0xf]
        %s1014 = scalar_lea.vmem %s1, 40
        %v1015 = vld [vmem:[%s1014] sm:$0xff]
        %v1018 = vcombine.high %v1012, %v1012
        %1019 = vrot.lane.b32.xlu0 %v1012, 108
        %v1020 = vpop.permute.xlu0 %1019
        %1021 = vrot.lane.b32.xlu0 %v1018, 108
        %v1022 = vpop.permute.xlu0 %1021
        %1023 = vrot.lane.b32.xlu0 %v1013, 108
        %v1024 = vpop.permute.xlu0 %1023
        %vm1025 = vcmask 883712
        %v1026 = vsel %vm1025, %v1020, %v1022
        %v1027 = vsel %vm1025, %v1022, %v1024
        %v1029 = vsel %vm181, %v1015, 0
        %v1031 = vsel %vm185, %v1026, 0
        %v1033 = vsel %vm185, %v1027, 0
        %v1035 = vsel %vm185, %v1024, 0
        %1037 = vmatprep.subr.mxu0 %v1033
        %1038 = vmatpush1.msra.mxu0 %v1031
        %1039 = vmatprep.subr.mxu0 0.0
        %1040 = vmatpush1.msra.mxu0 0.0
        %1041 = vmatprep.subr.mxu0 0.0
        %1042 = vmatpush1.msra.mxu0 0.0
        %1043 = vmatprep.subr.mxu0 0.0
        %1044 = vmatpush1.msra.mxu0 0.0
        %1045 = vmatprep.subr.mxu0 0.0
        %1046 = vmatpush1.msra.mxu0 0.0
        %1047 = vmatprep.subr.mxu0 0.0
        %1048 = vmatpush1.msra.mxu0 0.0
        %1049 = vmatprep.subr.mxu0 0.0
        %1050 = vmatpush1.msra.mxu0 0.0
        %1051 = vmatprep.subr.mxu0 0.0
        %1052 = vmatpush1.msra.mxu0 0.0
        %1053 = vmatprep.subr.mxu0 0.0
        %1054 = vmatpush1.msra.mxu0 0.0
        %1055 = vmatprep.subr.mxu0 0.0
        %1056 = vmatpush1.msra.mxu0 0.0
        %1057 = vmatprep.subr.mxu0 0.0
        %1058 = vmatpush1.msra.mxu0 0.0
        %1059 = vmatprep.subr.mxu0 0.0
        %1060 = vmatpush1.msra.mxu0 0.0
        %1061 = vmatprep.subr.mxu0 0.0
        %1062 = vmatpush1.msra.mxu0 0.0
        %1063 = vmatprep.subr.mxu0 0.0
        %1064 = vmatpush1.msra.mxu0 0.0
        %1065 = vmatprep.subr.mxu0 0.0
        %1066 = vmatpush1.msra.mxu0 0.0
        %1067 = vmatprep.subr.mxu0 0.0
        %1068 = vmatpush1.msra.mxu0 0.0
        %1069 = vmatprep.subr.mxu0 0.0
        %1070 = vmatpush1.msra.mxu0 0.0
        %1071 = vmatprep.subr.mxu0 0.0
        %1072 = vmatpush1.msra.mxu0 0.0
        %1073 = vmatprep.subr.mxu0 0.0
        %1074 = vmatpush1.msra.mxu0 0.0
        %1075 = vmatprep.subr.mxu0 0.0
        %1076 = vmatpush1.msra.mxu0 0.0
        %1077 = vmatprep.subr.mxu0 0.0
        %1078 = vmatpush1.msra.mxu0 0.0
        %1079 = vmatprep.subr.mxu0 0.0
        %1080 = vmatpush1.msra.mxu0 0.0
        %1081 = vmatprep.subr.mxu0 0.0
        %1082 = vmatpush1.msra.mxu0 0.0
        %1083 = vmatprep.subr.mxu0 0.0
        %1084 = vmatpush1.msra.mxu0 0.0
        %1085 = vmatprep.subr.mxu0 0.0
        %1086 = vmatpush1.msra.mxu0 0.0
        %1087 = vmatprep.subr.mxu0 0.0
        %1088 = vmatpush1.msra.mxu0 0.0
        %1089 = vmatprep.subr.mxu0 0.0
        %1090 = vmatpush1.msra.mxu0 0.0
        %1091 = vmatprep.subr.mxu0 0.0
        %1092 = vmatpush1.msra.mxu0 0.0
        %1093 = vmatprep.subr.mxu0 0.0
        %1094 = vmatpush1.msra.mxu0 0.0
        %1095 = vmatprep.subr.mxu0 0.0
        %1096 = vmatpush1.msra.mxu0 0.0
        %1097 = vmatprep.subr.mxu0 0.0
        %1098 = vmatpush1.msra.mxu0 0.0
        %1099 = vmatprep.subr.mxu0 0.0
        %1100 = vmatpush1.msra.mxu0 0.0
        %1101 = vmatprep.mubr.f32.mxu0 0.0
        %1102 = vmatmul.mubr.f32.gmra.mrb[0].mxu0 %v1029
        %v1103 = vpop.f32.mrb[0].mxu0
        %v1104 = vadd.f32 0.0, %v1103
        %v1105 = vpop.f32.mrb[0].mxu0
        %v1106 = vadd.f32 0.0, %v1105
        %1107 = vdwg.mxu0
        %1108 = vmatprep.subr.mxu0 0.0
        %1109 = vmatpush1.msra.mxu0 %v1035
        %1110 = vmatprep.subr.mxu0 0.0
        %1111 = vmatpush1.msra.mxu0 0.0
        %1112 = vmatprep.subr.mxu0 0.0
        %1113 = vmatpush1.msra.mxu0 0.0
        %1114 = vmatprep.subr.mxu0 0.0
        %1115 = vmatpush1.msra.mxu0 0.0
        %1116 = vmatprep.subr.mxu0 0.0
        %1117 = vmatpush1.msra.mxu0 0.0
        %1118 = vmatprep.subr.mxu0 0.0
        %1119 = vmatpush1.msra.mxu0 0.0
        %1120 = vmatprep.subr.mxu0 0.0
        %1121 = vmatpush1.msra.mxu0 0.0
        %1122 = vmatprep.subr.mxu0 0.0
        %1123 = vmatpush1.msra.mxu0 0.0
        %1124 = vmatprep.subr.mxu0 0.0
        %1125 = vmatpush1.msra.mxu0 0.0
        %1126 = vmatprep.subr.mxu0 0.0
        %1127 = vmatpush1.msra.mxu0 0.0
        %1128 = vmatprep.subr.mxu0 0.0
        %1129 = vmatpush1.msra.mxu0 0.0
        %1130 = vmatprep.subr.mxu0 0.0
        %1131 = vmatpush1.msra.mxu0 0.0
        %1132 = vmatprep.subr.mxu0 0.0
        %1133 = vmatpush1.msra.mxu0 0.0
        %1134 = vmatprep.subr.mxu0 0.0
        %1135 = vmatpush1.msra.mxu0 0.0
        %1136 = vmatprep.subr.mxu0 0.0
        %1137 = vmatpush1.msra.mxu0 0.0
        %1138 = vmatprep.subr.mxu0 0.0
        %1139 = vmatpush1.msra.mxu0 0.0
        %1140 = vmatprep.subr.mxu0 0.0
        %1141 = vmatpush1.msra.mxu0 0.0
        %1142 = vmatprep.subr.mxu0 0.0
        %1143 = vmatpush1.msra.mxu0 0.0
        %1144 = vmatprep.subr.mxu0 0.0
        %1145 = vmatpush1.msra.mxu0 0.0
        %1146 = vmatprep.subr.mxu0 0.0
        %1147 = vmatpush1.msra.mxu0 0.0
        %1148 = vmatprep.subr.mxu0 0.0
        %1149 = vmatpush1.msra.mxu0 0.0
        %1150 = vmatprep.subr.mxu0 0.0
        %1151 = vmatpush1.msra.mxu0 0.0
        %1152 = vmatprep.subr.mxu0 0.0
        %1153 = vmatpush1.msra.mxu0 0.0
        %1154 = vmatprep.subr.mxu0 0.0
        %1155 = vmatpush1.msra.mxu0 0.0
        %1156 = vmatprep.subr.mxu0 0.0
        %1157 = vmatpush1.msra.mxu0 0.0
        %1158 = vmatprep.subr.mxu0 0.0
        %1159 = vmatpush1.msra.mxu0 0.0
        %1160 = vmatprep.subr.mxu0 0.0
        %1161 = vmatpush1.msra.mxu0 0.0
        %1162 = vmatprep.subr.mxu0 0.0
        %1163 = vmatpush1.msra.mxu0 0.0
        %1164 = vmatprep.subr.mxu0 0.0
        %1165 = vmatpush1.msra.mxu0 0.0
        %1166 = vmatprep.subr.mxu0 0.0
        %1167 = vmatpush1.msra.mxu0 0.0
        %1168 = vmatprep.subr.mxu0 0.0
        %1169 = vmatpush1.msra.mxu0 0.0
        %1170 = vmatprep.subr.mxu0 0.0
        %1171 = vmatpush1.msra.mxu0 0.0
        %1172 = vmatprep.mubr.f32.mxu0 0.0
        %1173 = vmatmul.mubr.f32.gmra.mrb[0].mxu0 %v1029
        %v1174 = vpop.f32.mrb[0].mxu0
        %v1175 = vadd.f32 0.0, %v1174
        %v1176 = vpop.f32.mrb[0].mxu0
        %1177 = vdwg.mxu0
        %v1178 = vadd.f32 %v1009, %v1104
        %v1179 = vadd.f32 %v1010, %v1106
        %v1180 = vadd.f32 %v1011, %v1175
        %v1181 = vld [vmem:[%s168] sm:$0xff]
        %v1182 = vld [vmem:[%s168 + $0x8] sm:$0xf]
        %s1183 = scalar_lea.vmem %s1, 48
        %v1184 = vld [vmem:[%s1183] sm:$0xff]
        %v1187 = vcombine.high %v1181, %v1181
        %1188 = vrot.lane.b32.xlu0 %v1181, 92
        %v1189 = vpop.permute.xlu0 %1188
        %1190 = vrot.lane.b32.xlu0 %v1187, 92
        %v1191 = vpop.permute.xlu0 %1190
        %1192 = vrot.lane.b32.xlu0 %v1182, 92
        %v1193 = vpop.permute.xlu0 %1192
        %vm1194 = vcmask 752640
        %v1195 = vsel %vm1194, %v1189, %v1191
        %v1196 = vsel %vm1194, %v1191, %v1193
        %v1198 = vsel %vm181, %v1184, 0
        %v1200 = vsel %vm185, %v1195, 0
        %v1202 = vsel %vm185, %v1196, 0
        %v1204 = vsel %vm185, %v1193, 0
        %1206 = vmatprep.subr.mxu0 %v1202
        %1207 = vmatpush1.msra.mxu0 %v1200
        %1208 = vmatprep.subr.mxu0 0.0
        %1209 = vmatpush1.msra.mxu0 0.0
        %1210 = vmatprep.subr.mxu0 0.0
        %1211 = vmatpush1.msra.mxu0 0.0
        %1212 = vmatprep.subr.mxu0 0.0
        %1213 = vmatpush1.msra.mxu0 0.0
        %1214 = vmatprep.subr.mxu0 0.0
        %1215 = vmatpush1.msra.mxu0 0.0
        %1216 = vmatprep.subr.mxu0 0.0
        %1217 = vmatpush1.msra.mxu0 0.0
        %1218 = vmatprep.subr.mxu0 0.0
        %1219 = vmatpush1.msra.mxu0 0.0
        %1220 = vmatprep.subr.mxu0 0.0
        %1221 = vmatpush1.msra.mxu0 0.0
        %1222 = vmatprep.subr.mxu0 0.0
        %1223 = vmatpush1.msra.mxu0 0.0
        %1224 = vmatprep.subr.mxu0 0.0
        %1225 = vmatpush1.msra.mxu0 0.0
        %1226 = vmatprep.subr.mxu0 0.0
        %1227 = vmatpush1.msra.mxu0 0.0
        %1228 = vmatprep.subr.mxu0 0.0
        %1229 = vmatpush1.msra.mxu0 0.0
        %1230 = vmatprep.subr.mxu0 0.0
        %1231 = vmatpush1.msra.mxu0 0.0
        %1232 = vmatprep.subr.mxu0 0.0
        %1233 = vmatpush1.msra.mxu0 0.0
        %1234 = vmatprep.subr.mxu0 0.0
        %1235 = vmatpush1.msra.mxu0 0.0
        %1236 = vmatprep.subr.mxu0 0.0
        %1237 = vmatpush1.msra.mxu0 0.0
        %1238 = vmatprep.subr.mxu0 0.0
        %1239 = vmatpush1.msra.mxu0 0.0
        %1240 = vmatprep.subr.mxu0 0.0
        %1241 = vmatpush1.msra.mxu0 0.0
        %1242 = vmatprep.subr.mxu0 0.0
        %1243 = vmatpush1.msra.mxu0 0.0
        %1244 = vmatprep.subr.mxu0 0.0
        %1245 = vmatpush1.msra.mxu0 0.0
        %1246 = vmatprep.subr.mxu0 0.0
        %1247 = vmatpush1.msra.mxu0 0.0
        %1248 = vmatprep.subr.mxu0 0.0
        %1249 = vmatpush1.msra.mxu0 0.0
        %1250 = vmatprep.subr.mxu0 0.0
        %1251 = vmatpush1.msra.mxu0 0.0
        %1252 = vmatprep.subr.mxu0 0.0
        %1253 = vmatpush1.msra.mxu0 0.0
        %1254 = vmatprep.subr.mxu0 0.0
        %1255 = vmatpush1.msra.mxu0 0.0
        %1256 = vmatprep.subr.mxu0 0.0
        %1257 = vmatpush1.msra.mxu0 0.0
        %1258 = vmatprep.subr.mxu0 0.0
        %1259 = vmatpush1.msra.mxu0 0.0
        %1260 = vmatprep.subr.mxu0 0.0
        %1261 = vmatpush1.msra.mxu0 0.0
        %1262 = vmatprep.subr.mxu0 0.0
        %1263 = vmatpush1.msra.mxu0 0.0
        %1264 = vmatprep.subr.mxu0 0.0
        %1265 = vmatpush1.msra.mxu0 0.0
        %1266 = vmatprep.subr.mxu0 0.0
        %1267 = vmatpush1.msra.mxu0 0.0
        %1268 = vmatprep.subr.mxu0 0.0
        %1269 = vmatpush1.msra.mxu0 0.0
        %1270 = vmatprep.mubr.f32.mxu0 0.0
        %1271 = vmatmul.mubr.f32.gmra.mrb[0].mxu0 %v1198
        %v1272 = vpop.f32.mrb[0].mxu0
        %v1273 = vadd.f32 0.0, %v1272
        %v1274 = vpop.f32.mrb[0].mxu0
        %v1275 = vadd.f32 0.0, %v1274
        %1276 = vdwg.mxu0
        %1277 = vmatprep.subr.mxu0 0.0
        %1278 = vmatpush1.msra.mxu0 %v1204
        %1279 = vmatprep.subr.mxu0 0.0
        %1280 = vmatpush1.msra.mxu0 0.0
        %1281 = vmatprep.subr.mxu0 0.0
        %1282 = vmatpush1.msra.mxu0 0.0
        %1283 = vmatprep.subr.mxu0 0.0
        %1284 = vmatpush1.msra.mxu0 0.0
        %1285 = vmatprep.subr.mxu0 0.0
        %1286 = vmatpush1.msra.mxu0 0.0
        %1287 = vmatprep.subr.mxu0 0.0
        %1288 = vmatpush1.msra.mxu0 0.0
        %1289 = vmatprep.subr.mxu0 0.0
        %1290 = vmatpush1.msra.mxu0 0.0
        %1291 = vmatprep.subr.mxu0 0.0
        %1292 = vmatpush1.msra.mxu0 0.0
        %1293 = vmatprep.subr.mxu0 0.0
        %1294 = vmatpush1.msra.mxu0 0.0
        %1295 = vmatprep.subr.mxu0 0.0
        %1296 = vmatpush1.msra.mxu0 0.0
        %1297 = vmatprep.subr.mxu0 0.0
        %1298 = vmatpush1.msra.mxu0 0.0
        %1299 = vmatprep.subr.mxu0 0.0
        %1300 = vmatpush1.msra.mxu0 0.0
        %1301 = vmatprep.subr.mxu0 0.0
        %1302 = vmatpush1.msra.mxu0 0.0
        %1303 = vmatprep.subr.mxu0 0.0
        %1304 = vmatpush1.msra.mxu0 0.0
        %1305 = vmatprep.subr.mxu0 0.0
        %1306 = vmatpush1.msra.mxu0 0.0
        %1307 = vmatprep.subr.mxu0 0.0
        %1308 = vmatpush1.msra.mxu0 0.0
        %1309 = vmatprep.subr.mxu0 0.0
        %1310 = vmatpush1.msra.mxu0 0.0
        %1311 = vmatprep.subr.mxu0 0.0
        %1312 = vmatpush1.msra.mxu0 0.0
        %1313 = vmatprep.subr.mxu0 0.0
        %1314 = vmatpush1.msra.mxu0 0.0
        %1315 = vmatprep.subr.mxu0 0.0
        %1316 = vmatpush1.msra.mxu0 0.0
        %1317 = vmatprep.subr.mxu0 0.0
        %1318 = vmatpush1.msra.mxu0 0.0
        %1319 = vmatprep.subr.mxu0 0.0
        %1320 = vmatpush1.msra.mxu0 0.0
        %1321 = vmatprep.subr.mxu0 0.0
        %1322 = vmatpush1.msra.mxu0 0.0
        %1323 = vmatprep.subr.mxu0 0.0
        %1324 = vmatpush1.msra.mxu0 0.0
        %1325 = vmatprep.subr.mxu0 0.0
        %1326 = vmatpush1.msra.mxu0 0.0
        %1327 = vmatprep.subr.mxu0 0.0
        %1328 = vmatpush1.msra.mxu0 0.0
        %1329 = vmatprep.subr.mxu0 0.0
        %1330 = vmatpush1.msra.mxu0 0.0
        %1331 = vmatprep.subr.mxu0 0.0
        %1332 = vmatpush1.msra.mxu0 0.0
        %1333 = vmatprep.subr.mxu0 0.0
        %1334 = vmatpush1.msra.mxu0 0.0
        %1335 = vmatprep.subr.mxu0 0.0
        %1336 = vmatpush1.msra.mxu0 0.0
        %1337 = vmatprep.subr.mxu0 0.0
        %1338 = vmatpush1.msra.mxu0 0.0
        %1339 = vmatprep.subr.mxu0 0.0
        %1340 = vmatpush1.msra.mxu0 0.0
        %1341 = vmatprep.mubr.f32.mxu0 0.0
        %1342 = vmatmul.mubr.f32.gmra.mrb[0].mxu0 %v1198
        %v1343 = vpop.f32.mrb[0].mxu0
        %v1344 = vadd.f32 0.0, %v1343
        %v1345 = vpop.f32.mrb[0].mxu0
        %1346 = vdwg.mxu0
        %v1347 = vadd.f32 %v1178, %v1273
        %v1348 = vadd.f32 %v1179, %v1275
        %v1349 = vadd.f32 %v1180, %v1344
        %v1350 = vld [vmem:[%s168] sm:$0xff]
        %v1351 = vld [vmem:[%s168 + $0x8] sm:$0xf]
        %s1352 = scalar_lea.vmem %s1, 56
        %v1353 = vld [vmem:[%s1352] sm:$0xff]
        %v1356 = vcombine.high %v1350, %v1350
        %1357 = vrot.lane.b32.xlu0 %v1350, 91
        %v1358 = vpop.permute.xlu0 %1357
        %1359 = vrot.lane.b32.xlu0 %v1356, 91
        %v1360 = vpop.permute.xlu0 %1359
        %1361 = vrot.lane.b32.xlu0 %v1351, 91
        %v1362 = vpop.permute.xlu0 %1361
        %vm1363 = vcmask 744448
        %v1364 = vsel %vm1363, %v1358, %v1360
        %v1365 = vsel %vm1363, %v1360, %v1362
        %v1367 = vsel %vm181, %v1353, 0
        %v1369 = vsel %vm185, %v1364, 0
        %v1371 = vsel %vm185, %v1365, 0
        %v1373 = vsel %vm185, %v1362, 0
        %1375 = vmatprep.subr.mxu0 %v1371
        %1376 = vmatpush1.msra.mxu0 %v1369
        %1377 = vmatprep.subr.mxu0 0.0
        %1378 = vmatpush1.msra.mxu0 0.0
        %1379 = vmatprep.subr.mxu0 0.0
        %1380 = vmatpush1.msra.mxu0 0.0
        %1381 = vmatprep.subr.mxu0 0.0
        %1382 = vmatpush1.msra.mxu0 0.0
        %1383 = vmatprep.subr.mxu0 0.0
        %1384 = vmatpush1.msra.mxu0 0.0
        %1385 = vmatprep.subr.mxu0 0.0
        %1386 = vmatpush1.msra.mxu0 0.0
        %1387 = vmatprep.subr.mxu0 0.0
        %1388 = vmatpush1.msra.mxu0 0.0
        %1389 = vmatprep.subr.mxu0 0.0
        %1390 = vmatpush1.msra.mxu0 0.0
        %1391 = vmatprep.subr.mxu0 0.0
        %1392 = vmatpush1.msra.mxu0 0.0
        %1393 = vmatprep.subr.mxu0 0.0
        %1394 = vmatpush1.msra.mxu0 0.0
        %1395 = vmatprep.subr.mxu0 0.0
        %1396 = vmatpush1.msra.mxu0 0.0
        %1397 = vmatprep.subr.mxu0 0.0
        %1398 = vmatpush1.msra.mxu0 0.0
        %1399 = vmatprep.subr.mxu0 0.0
        %1400 = vmatpush1.msra.mxu0 0.0
        %1401 = vmatprep.subr.mxu0 0.0
        %1402 = vmatpush1.msra.mxu0 0.0
        %1403 = vmatprep.subr.mxu0 0.0
        %1404 = vmatpush1.msra.mxu0 0.0
        %1405 = vmatprep.subr.mxu0 0.0
        %1406 = vmatpush1.msra.mxu0 0.0
        %1407 = vmatprep.subr.mxu0 0.0
        %1408 = vmatpush1.msra.mxu0 0.0
        %1409 = vmatprep.subr.mxu0 0.0
        %1410 = vmatpush1.msra.mxu0 0.0
        %1411 = vmatprep.subr.mxu0 0.0
        %1412 = vmatpush1.msra.mxu0 0.0
        %1413 = vmatprep.subr.mxu0 0.0
        %1414 = vmatpush1.msra.mxu0 0.0
        %1415 = vmatprep.subr.mxu0 0.0
        %1416 = vmatpush1.msra.mxu0 0.0
        %1417 = vmatprep.subr.mxu0 0.0
        %1418 = vmatpush1.msra.mxu0 0.0
        %1419 = vmatprep.subr.mxu0 0.0
        %1420 = vmatpush1.msra.mxu0 0.0
        %1421 = vmatprep.subr.mxu0 0.0
        %1422 = vmatpush1.msra.mxu0 0.0
        %1423 = vmatprep.subr.mxu0 0.0
        %1424 = vmatpush1.msra.mxu0 0.0
        %1425 = vmatprep.subr.mxu0 0.0
        %1426 = vmatpush1.msra.mxu0 0.0
        %1427 = vmatprep.subr.mxu0 0.0
        %1428 = vmatpush1.msra.mxu0 0.0
        %1429 = vmatprep.subr.mxu0 0.0
        %1430 = vmatpush1.msra.mxu0 0.0
        %1431 = vmatprep.subr.mxu0 0.0
        %1432 = vmatpush1.msra.mxu0 0.0
        %1433 = vmatprep.subr.mxu0 0.0
        %1434 = vmatpush1.msra.mxu0 0.0
        %1435 = vmatprep.subr.mxu0 0.0
        %1436 = vmatpush1.msra.mxu0 0.0
        %1437 = vmatprep.subr.mxu0 0.0
        %1438 = vmatpush1.msra.mxu0 0.0
        %1439 = vmatprep.mubr.f32.mxu0 0.0
        %1440 = vmatmul.mubr.f32.gmra.mrb[0].mxu0 %v1367
        %v1441 = vpop.f32.mrb[0].mxu0
        %v1442 = vadd.f32 0.0, %v1441
        %v1443 = vpop.f32.mrb[0].mxu0
        %v1444 = vadd.f32 0.0, %v1443
        %1445 = vdwg.mxu0
        %1446 = vmatprep.subr.mxu0 0.0
        %1447 = vmatpush1.msra.mxu0 %v1373
        %1448 = vmatprep.subr.mxu0 0.0
        %1449 = vmatpush1.msra.mxu0 0.0
        %1450 = vmatprep.subr.mxu0 0.0
        %1451 = vmatpush1.msra.mxu0 0.0
        %1452 = vmatprep.subr.mxu0 0.0
        %1453 = vmatpush1.msra.mxu0 0.0
        %1454 = vmatprep.subr.mxu0 0.0
        %1455 = vmatpush1.msra.mxu0 0.0
        %1456 = vmatprep.subr.mxu0 0.0
        %1457 = vmatpush1.msra.mxu0 0.0
        %1458 = vmatprep.subr.mxu0 0.0
        %1459 = vmatpush1.msra.mxu0 0.0
        %1460 = vmatprep.subr.mxu0 0.0
        %1461 = vmatpush1.msra.mxu0 0.0
        %1462 = vmatprep.subr.mxu0 0.0
        %1463 = vmatpush1.msra.mxu0 0.0
        %1464 = vmatprep.subr.mxu0 0.0
        %1465 = vmatpush1.msra.mxu0 0.0
        %1466 = vmatprep.subr.mxu0 0.0
        %1467 = vmatpush1.msra.mxu0 0.0
        %1468 = vmatprep.subr.mxu0 0.0
        %1469 = vmatpush1.msra.mxu0 0.0
        %1470 = vmatprep.subr.mxu0 0.0
        %1471 = vmatpush1.msra.mxu0 0.0
        %1472 = vmatprep.subr.mxu0 0.0
        %1473 = vmatpush1.msra.mxu0 0.0
        %1474 = vmatprep.subr.mxu0 0.0
        %1475 = vmatpush1.msra.mxu0 0.0
        %1476 = vmatprep.subr.mxu0 0.0
        %1477 = vmatpush1.msra.mxu0 0.0
        %1478 = vmatprep.subr.mxu0 0.0
        %1479 = vmatpush1.msra.mxu0 0.0
        %1480 = vmatprep.subr.mxu0 0.0
        %1481 = vmatpush1.msra.mxu0 0.0
        %1482 = vmatprep.subr.mxu0 0.0
        %1483 = vmatpush1.msra.mxu0 0.0
        %1484 = vmatprep.subr.mxu0 0.0
        %1485 = vmatpush1.msra.mxu0 0.0
        %1486 = vmatprep.subr.mxu0 0.0
        %1487 = vmatpush1.msra.mxu0 0.0
        %1488 = vmatprep.subr.mxu0 0.0
        %1489 = vmatpush1.msra.mxu0 0.0
        %1490 = vmatprep.subr.mxu0 0.0
        %1491 = vmatpush1.msra.mxu0 0.0
        %1492 = vmatprep.subr.mxu0 0.0
        %1493 = vmatpush1.msra.mxu0 0.0
        %1494 = vmatprep.subr.mxu0 0.0
        %1495 = vmatpush1.msra.mxu0 0.0
        %1496 = vmatprep.subr.mxu0 0.0
        %1497 = vmatpush1.msra.mxu0 0.0
        %1498 = vmatprep.subr.mxu0 0.0
        %1499 = vmatpush1.msra.mxu0 0.0
        %1500 = vmatprep.subr.mxu0 0.0
        %1501 = vmatpush1.msra.mxu0 0.0
        %1502 = vmatprep.subr.mxu0 0.0
        %1503 = vmatpush1.msra.mxu0 0.0
        %1504 = vmatprep.subr.mxu0 0.0
        %1505 = vmatpush1.msra.mxu0 0.0
        %1506 = vmatprep.subr.mxu0 0.0
        %1507 = vmatpush1.msra.mxu0 0.0
        %1508 = vmatprep.subr.mxu0 0.0
        %1509 = vmatpush1.msra.mxu0 0.0
        %1510 = vmatprep.mubr.f32.mxu0 0.0
        %1511 = vmatmul.mubr.f32.gmra.mrb[0].mxu0 %v1367
        %v1512 = vpop.f32.mrb[0].mxu0
        %v1513 = vadd.f32 0.0, %v1512
        %v1514 = vpop.f32.mrb[0].mxu0
        %1515 = vdwg.mxu0
        %v1516 = vadd.f32 %v1347, %v1442
        %v1517 = vadd.f32 %v1348, %v1444
        %v1518 = vadd.f32 %v1349, %v1513
        %v1519 = vld [vmem:[%s168] sm:$0xff]
        %v1520 = vld [vmem:[%s168 + $0x8] sm:$0xf]
        %s1521 = scalar_lea.vmem %s1, 64
        %v1522 = vld [vmem:[%s1521] sm:$0xff]
        %v1525 = vcombine.high %v1519, %v1519
        %1526 = vrot.lane.b32.xlu0 %v1519, 90
        %v1527 = vpop.permute.xlu0 %1526
        %1528 = vrot.lane.b32.xlu0 %v1525, 90
        %v1529 = vpop.permute.xlu0 %1528
        %1530 = vrot.lane.b32.xlu0 %v1520, 90
        %v1531 = vpop.permute.xlu0 %1530
        %vm1532 = vcmask 736256
        %v1533 = vsel %vm1532, %v1527, %v1529
        %v1534 = vsel %vm1532, %v1529, %v1531
        %v1536 = vsel %vm181, %v1522, 0
        %v1538 = vsel %vm185, %v1533, 0
        %v1540 = vsel %vm185, %v1534, 0
        %v1542 = vsel %vm185, %v1531, 0
        %1544 = vmatprep.subr.mxu0 %v1540
        %1545 = vmatpush1.msra.mxu0 %v1538
        %1546 = vmatprep.subr.mxu0 0.0
        %1547 = vmatpush1.msra.mxu0 0.0
        %1548 = vmatprep.subr.mxu0 0.0
        %1549 = vmatpush1.msra.mxu0 0.0
        %1550 = vmatprep.subr.mxu0 0.0
        %1551 = vmatpush1.msra.mxu0 0.0
        %1552 = vmatprep.subr.mxu0 0.0
        %1553 = vmatpush1.msra.mxu0 0.0
        %1554 = vmatprep.subr.mxu0 0.0
        %1555 = vmatpush1.msra.mxu0 0.0
        %1556 = vmatprep.subr.mxu0 0.0
        %1557 = vmatpush1.msra.mxu0 0.0
        %1558 = vmatprep.subr.mxu0 0.0
        %1559 = vmatpush1.msra.mxu0 0.0
        %1560 = vmatprep.subr.mxu0 0.0
        %1561 = vmatpush1.msra.mxu0 0.0
        %1562 = vmatprep.subr.mxu0 0.0
        %1563 = vmatpush1.msra.mxu0 0.0
        %1564 = vmatprep.subr.mxu0 0.0
        %1565 = vmatpush1.msra.mxu0 0.0
        %1566 = vmatprep.subr.mxu0 0.0
        %1567 = vmatpush1.msra.mxu0 0.0
        %1568 = vmatprep.subr.mxu0 0.0
        %1569 = vmatpush1.msra.mxu0 0.0
        %1570 = vmatprep.subr.mxu0 0.0
        %1571 = vmatpush1.msra.mxu0 0.0
        %1572 = vmatprep.subr.mxu0 0.0
        %1573 = vmatpush1.msra.mxu0 0.0
        %1574 = vmatprep.subr.mxu0 0.0
        %1575 = vmatpush1.msra.mxu0 0.0
        %1576 = vmatprep.subr.mxu0 0.0
        %1577 = vmatpush1.msra.mxu0 0.0
        %1578 = vmatprep.subr.mxu0 0.0
        %1579 = vmatpush1.msra.mxu0 0.0
        %1580 = vmatprep.subr.mxu0 0.0
        %1581 = vmatpush1.msra.mxu0 0.0
        %1582 = vmatprep.subr.mxu0 0.0
        %1583 = vmatpush1.msra.mxu0 0.0
        %1584 = vmatprep.subr.mxu0 0.0
        %1585 = vmatpush1.msra.mxu0 0.0
        %1586 = vmatprep.subr.mxu0 0.0
        %1587 = vmatpush1.msra.mxu0 0.0
        %1588 = vmatprep.subr.mxu0 0.0
        %1589 = vmatpush1.msra.mxu0 0.0
        %1590 = vmatprep.subr.mxu0 0.0
        %1591 = vmatpush1.msra.mxu0 0.0
        %1592 = vmatprep.subr.mxu0 0.0
        %1593 = vmatpush1.msra.mxu0 0.0
        %1594 = vmatprep.subr.mxu0 0.0
        %1595 = vmatpush1.msra.mxu0 0.0
        %1596 = vmatprep.subr.mxu0 0.0
        %1597 = vmatpush1.msra.mxu0 0.0
        %1598 = vmatprep.subr.mxu0 0.0
        %1599 = vmatpush1.msra.mxu0 0.0
        %1600 = vmatprep.subr.mxu0 0.0
        %1601 = vmatpush1.msra.mxu0 0.0
        %1602 = vmatprep.subr.mxu0 0.0
        %1603 = vmatpush1.msra.mxu0 0.0
        %1604 = vmatprep.subr.mxu0 0.0
        %1605 = vmatpush1.msra.mxu0 0.0
        %1606 = vmatprep.subr.mxu0 0.0
        %1607 = vmatpush1.msra.mxu0 0.0
        %1608 = vmatprep.mubr.f32.mxu0 0.0
        %1609 = vmatmul.mubr.f32.gmra.mrb[0].mxu0 %v1536
        %v1610 = vpop.f32.mrb[0].mxu0
        %v1611 = vadd.f32 0.0, %v1610
        %v1612 = vpop.f32.mrb[0].mxu0
        %v1613 = vadd.f32 0.0, %v1612
        %1614 = vdwg.mxu0
        %1615 = vmatprep.subr.mxu0 0.0
        %1616 = vmatpush1.msra.mxu0 %v1542
        %1617 = vmatprep.subr.mxu0 0.0
        %1618 = vmatpush1.msra.mxu0 0.0
        %1619 = vmatprep.subr.mxu0 0.0
        %1620 = vmatpush1.msra.mxu0 0.0
        %1621 = vmatprep.subr.mxu0 0.0
        %1622 = vmatpush1.msra.mxu0 0.0
        %1623 = vmatprep.subr.mxu0 0.0
        %1624 = vmatpush1.msra.mxu0 0.0
        %1625 = vmatprep.subr.mxu0 0.0
        %1626 = vmatpush1.msra.mxu0 0.0
        %1627 = vmatprep.subr.mxu0 0.0
        %1628 = vmatpush1.msra.mxu0 0.0
        %1629 = vmatprep.subr.mxu0 0.0
        %1630 = vmatpush1.msra.mxu0 0.0
        %1631 = vmatprep.subr.mxu0 0.0
        %1632 = vmatpush1.msra.mxu0 0.0
        %1633 = vmatprep.subr.mxu0 0.0
        %1634 = vmatpush1.msra.mxu0 0.0
        %1635 = vmatprep.subr.mxu0 0.0
        %1636 = vmatpush1.msra.mxu0 0.0
        %1637 = vmatprep.subr.mxu0 0.0
        %1638 = vmatpush1.msra.mxu0 0.0
        %1639 = vmatprep.subr.mxu0 0.0
        %1640 = vmatpush1.msra.mxu0 0.0
        %1641 = vmatprep.subr.mxu0 0.0
        %1642 = vmatpush1.msra.mxu0 0.0
        %1643 = vmatprep.subr.mxu0 0.0
        %1644 = vmatpush1.msra.mxu0 0.0
        %1645 = vmatprep.subr.mxu0 0.0
        %1646 = vmatpush1.msra.mxu0 0.0
        %1647 = vmatprep.subr.mxu0 0.0
        %1648 = vmatpush1.msra.mxu0 0.0
        %1649 = vmatprep.subr.mxu0 0.0
        %1650 = vmatpush1.msra.mxu0 0.0
        %1651 = vmatprep.subr.mxu0 0.0
        %1652 = vmatpush1.msra.mxu0 0.0
        %1653 = vmatprep.subr.mxu0 0.0
        %1654 = vmatpush1.msra.mxu0 0.0
        %1655 = vmatprep.subr.mxu0 0.0
        %1656 = vmatpush1.msra.mxu0 0.0
        %1657 = vmatprep.subr.mxu0 0.0
        %1658 = vmatpush1.msra.mxu0 0.0
        %1659 = vmatprep.subr.mxu0 0.0
        %1660 = vmatpush1.msra.mxu0 0.0
        %1661 = vmatprep.subr.mxu0 0.0
        %1662 = vmatpush1.msra.mxu0 0.0
        %1663 = vmatprep.subr.mxu0 0.0
        %1664 = vmatpush1.msra.mxu0 0.0
        %1665 = vmatprep.subr.mxu0 0.0
        %1666 = vmatpush1.msra.mxu0 0.0
        %1667 = vmatprep.subr.mxu0 0.0
        %1668 = vmatpush1.msra.mxu0 0.0
        %1669 = vmatprep.subr.mxu0 0.0
        %1670 = vmatpush1.msra.mxu0 0.0
        %1671 = vmatprep.subr.mxu0 0.0
        %1672 = vmatpush1.msra.mxu0 0.0
        %1673 = vmatprep.subr.mxu0 0.0
        %1674 = vmatpush1.msra.mxu0 0.0
        %1675 = vmatprep.subr.mxu0 0.0
        %1676 = vmatpush1.msra.mxu0 0.0
        %1677 = vmatprep.subr.mxu0 0.0
        %1678 = vmatpush1.msra.mxu0 0.0
        %1679 = vmatprep.mubr.f32.mxu0 0.0
        %1680 = vmatmul.mubr.f32.gmra.mrb[0].mxu0 %v1536
        %v1681 = vpop.f32.mrb[0].mxu0
        %v1682 = vadd.f32 0.0, %v1681
        %v1683 = vpop.f32.mrb[0].mxu0
        %1684 = vdwg.mxu0
        %v1685 = vadd.f32 %v1516, %v1611
        %v1686 = vadd.f32 %v1517, %v1613
        %v1687 = vadd.f32 %v1518, %v1682
        %1688 = vst [vmem:[%s163] sm:$0xff] %v1685
        %1689 = vst [vmem:[%s163 + $0x8] sm:$0xff] %v1686
        %vm1690 = vcmask 261120
        %1691 = vst.msk [vmem:[%s163 + $0x10] sm:$0xff] %vm1690, %v1687
        %s1692 = sand.u32 %s93, 1
        %s1693 = scalar_lea.sflag [#allocation3], %s1692
        %s1694 = sand.u32 %s93, 1
        %s1695 = smul.addr %s1694, 24
        %s1696 = scalar_lea.vmem [#allocation2], %s1695
        // Predicated region
        $region33: #{tpu_custom_call.1} parent=31 // pred_check
          %p1697 = pneg %p103
        $region34: #{tpu_custom_call.1} parent=31 // pred_check_branch
          %1699 = sbr.rel (%p1697) target = $region36
        $region35: #{tpu_custom_call.1} parent=31 // pred_region
          %s1701 = ssub.s32 384, 384
          %1702 = vsyncadd %s1693, %s1701
          %s1703 = smul.addr %s17, 3
          %s1704 = smul.addr %s1703, 128
          %s1705 = scalar_lea.hbm %s3, %s1704
          %s1707 = sshll.u32 %s1696, 4
          %s1708 = int_to_ptr.vmem [resolvable:$true] %s1707
          %1710 = dma.vmem_to_hbm [thread:$0]  %s1708, 384, %s1705, %s1693
        $region36: #{tpu_custom_call.1} parent=31 // pred_fallthru
          _
      $region32: #{tpu_custom_call.1} parent=5 // pred_fallthru
        _
      %p1711 = scmp.le.s32.totalorder 2, %s12
      // Predicated region
      $region37: #{tpu_custom_call.1} parent=5 // pred_check
        %p1712 = pneg %p1711
      $region38: #{tpu_custom_call.1} parent=5 // pred_check_branch
        %1714 = sbr.rel (%p1712) target = $region40
      $region39: #{tpu_custom_call.1} parent=5 // pred_region
        %s1715 = ssub.s32 %s12, 2
        // Predicated region
        $region41: #{tpu_custom_call.1} parent=39 // pred_check
          %p1716 = pneg %p109
        $region42: #{tpu_custom_call.1} parent=39 // pred_check_branch
          %1718 = sbr.rel (%p1716) target = $region44
        $region43: #{tpu_custom_call.1} parent=39 // pred_region
          %s1719 = sand.u32 %s94, 1
          %s1720 = scalar_lea.sflag [#allocation3], %s1719
          %s1721 = sand.u32 %s94, 1
          %s1722 = smul.addr %s1721, 24
          %s1723 = scalar_lea.vmem [#allocation2], %s1722
          %1724 = dma.done %s1720, 384
        $region44: #{tpu_custom_call.1} parent=39 // pred_fallthru
          _
      $region40: #{tpu_custom_call.1} parent=5 // pred_fallthru
        _
    $region6: #{tpu_custom_call.1} parent=1 // loop_footer
      %s16 = sadd.s32 1, %s12
    $region7: #{tpu_custom_call.1} parent=1 // loop_footer_branch
      %11 = sbr.rel target = $region3
    $region8: #{tpu_custom_call.1} parent=1 // loop_exit
      _
    %1725 = vsyncpa [#allocation3], 1
    %s1726 = scalar_lea.sflag [#allocation3], 1
    %1727 = vsyncpa %s1726, 1

</llo_original>
